<compile_context>
chip_gen: v5e
topology: v5e:2x2
jax: 0.10.0
libtpu: 0.0.40
codegen_flags: <defaults>
</compile_context>

<pallas_src>
import functools

import jax
import jax.numpy as jnp
from jax.experimental import pallas as pl
from jax.experimental.pallas import tpu as pltpu

BN_EPS = 1e-5
MAX_NODES = 2111   # hard-coded in the reference forward pass
LANE = 128         # channel padding target (vreg lane width)
TM = 256           # node-axis row tile (raised from 128 per perf review)
TK = 256           # A_hat column (k) tile for the block-diagonal reduction


def _round_up(x, m):
    return (x + m - 1) // m * m


# --------------------------------------------------------------------------
# Pass 1 (per layer): z = dinv_rows * ((A + I)_tile @ XW), accumulated over the
# per-tile column-block window, plus per-tile column sum / sum-of-squares for
# the fused BatchNorm statistics.
# --------------------------------------------------------------------------
def _gcn_z_kernel(kidx_ref, kcnt_ref, a_ref, xw_ref, dinv_ref,
                  z_ref, stats_ref, acc_ref):
    # kidx_ref: (nrt, kmax) SMEM column-block index table (prefetched)
    # kcnt_ref: (nrt,)      SMEM number of valid column blocks per row tile
    # a_ref:  (TM, TK) bf16 block of (A + I) (exact 0/1 values)
    # xw_ref: (TK, C)  bf16 block of XW = (D^-1/2 X) @ W
    # dinv_ref: (TM, 1) f32 row scaling D^-1/2
    # z_ref: (TM, C) f32, stats_ref: (1, 2, C) f32, acc_ref: (TM, C) f32 scratch
    i = pl.program_id(0)
    k = pl.program_id(1)

    @pl.when(k == 0)
    def _():
        acc_ref[...] = jnp.zeros_like(acc_ref)

    # Only the column blocks inside this row tile's graph window contribute;
    # out-of-window steps repeat the previous block index (DMA skipped) and
    # the accumulate is skipped here.
    @pl.when(k < kcnt_ref[i])
    def _():
        acc_ref[...] += jnp.dot(a_ref[...], xw_ref[...],
                                preferred_element_type=jnp.float32)

    @pl.when(k == pl.num_programs(1) - 1)
    def _():
        z = dinv_ref[...] * acc_ref[...]          # f32 D^-1/2 row scaling
        z_ref[...] = z
        s = jnp.sum(z, axis=0, keepdims=True)     # (1, C)
        sq = jnp.sum(z * z, axis=0, keepdims=True)
        stats_ref[...] = jnp.concatenate([s, sq], axis=0)[None]   # (1, 2, C)


# --------------------------------------------------------------------------
# Pass 2 (per layer): out = relu((z - mean) * rsqrt(var + eps) * gamma + beta)
# (train-mode BatchNorm with biased variance, matching the PyTorch forward).
# --------------------------------------------------------------------------
def _bn_relu_kernel(z_ref, tot_ref, g_ref, be_ref, o_ref, *, n_valid):
    z = z_ref[...]                                # (TM, C) f32
    inv_n = 1.0 / float(n_valid)
    mean = tot_ref[0:1, :] * inv_n                # (1, C)
    ex2 = tot_ref[1:2, :] * inv_n
    var = ex2 - mean * mean
    inv_std = jax.lax.rsqrt(var + BN_EPS)         # EUP slot
    h = (z - mean) * (inv_std * g_ref[...]) + be_ref[...]
    o_ref[...] = jnp.maximum(h, 0.0).astype(o_ref.dtype)


def _gcn_bn_relu_layer(a_plus_i, xw_bf16, dinv_col, kidx, kcnt,
                       gamma, beta, n_valid, out_dtype):
    """One GCNConv + BatchNorm1d(batch stats) + ReLU layer, row/column tiled."""
    np_, cout = xw_bf16.shape
    nrt = np_ // TM
    kmax = np_ // TK

    z, stats = pl.pallas_call(
        _gcn_z_kernel,
        grid_spec=pltpu.PrefetchScalarGridSpec(
            num_scalar_prefetch=2,
            grid=(nrt, kmax),
            in_specs=[
                # (A + I) row/column block, column block chosen by the prefetched table
                pl.BlockSpec((TM, TK), lambda i, k, kidx, kcnt: (i, kidx[i, k])),
                # matching XW column block
                pl.BlockSpec((TK, cout), lambda i, k, kidx, kcnt: (kidx[i, k], 0)),
                # D^-1/2 rows of this tile (resident across k)
                pl.BlockSpec((TM, 1), lambda i, k, kidx, kcnt: (i, 0)),
            ],
            out_specs=[
                pl.BlockSpec((TM, cout), lambda i, k, kidx, kcnt: (i, 0)),
                pl.BlockSpec((1, 2, cout), lambda i, k, kidx, kcnt: (i, 0, 0)),
            ],
            scratch_shapes=[pltpu.VMEM((TM, cout), jnp.float32)],
        ),
        out_shape=[
            jax.ShapeDtypeStruct((np_, cout), jnp.float32),
            jax.ShapeDtypeStruct((nrt, 2, cout), jnp.float32),
        ],
        compiler_params=pltpu.CompilerParams(
            dimension_semantics=("parallel", "arbitrary")),
    )(kidx, kcnt, a_plus_i, xw_bf16, dinv_col)

    totals = jnp.sum(stats, axis=0)   # (2, cout): row 0 = sum, row 1 = sum of squares

    h = pl.pallas_call(
        functools.partial(_bn_relu_kernel, n_valid=n_valid),
        grid=(nrt,),
        in_specs=[
            pl.BlockSpec((TM, cout), lambda i: (i, 0)),
            pl.BlockSpec((2, cout), lambda i: (0, 0)),    # reduced BN stats (resident)
            pl.BlockSpec((1, cout), lambda i: (0, 0)),    # gamma
            pl.BlockSpec((1, cout), lambda i: (0, 0)),    # beta
        ],
        out_specs=pl.BlockSpec((TM, cout), lambda i: (i, 0)),
        out_shape=jax.ShapeDtypeStruct((np_, cout), out_dtype),
        compiler_params=pltpu.CompilerParams(dimension_semantics=("parallel",)),
    )(z, totals, gamma, beta)
    return h


def protein_module_forward(x, edge_index, batch, params, *, num_graphs):
    """x: [N, Din] f32; edge_index: [2, E] int32 (edges stay within graphs, as produced
    by PyG batching); batch: [N] int32 sorted by graph; num_graphs: static Python int."""
    N, din = x.shape
    hidden = params["w1"].shape[1]
    dout = params["w2"].shape[1]
    # The reference declares bn2 = BatchNorm1d(hidden_dim) but applies it to conv2's
    # output, so this implementation requires dout == hidden.
    assert dout == hidden, "bn2 is BatchNorm1d(hidden_dim) applied to conv2 output"

    np_ = _round_up(max(N, TM), TM)
    h_p = _round_up(hidden, LANE)
    o_p = _round_up(dout, LANE)
    nrt = np_ // TM
    kmax = np_ // TK

    src, dst = edge_index[0], edge_index[1]

    # --- glue: (A + I) directly in bf16 (exact 0/1 values); D^-1/2 kept in f32 ---
    diag = jnp.arange(N, dtype=jnp.int32)
    rows = jnp.concatenate([dst, diag])
    cols = jnp.concatenate([src, diag])
    a_plus_i = jnp.zeros((np_, np_), jnp.bfloat16).at[rows, cols].add(
        jnp.ones_like(rows, dtype=jnp.bfloat16))

    deg = jnp.zeros((N,), jnp.float32).at[dst].add(1.0) + 1.0   # edges in + self loop
    dinv = jax.lax.rsqrt(deg)                                   # f32, never rounded
    dinv_pad = jnp.zeros((np_,), jnp.float32).at[:N].set(dinv)  # zero on padded rows
    dinv_col = dinv_pad[:, None]                                # (np_, 1) for the kernel

    # --- per-graph offsets (block-sparse windows + dense-batch gather) ---
    counts = jnp.bincount(batch, length=num_graphs)
    offsets = jnp.concatenate([jnp.zeros((1,), counts.dtype), jnp.cumsum(counts)[:-1]])

    # Column-block window of each row tile: since nodes are sorted by graph and edges
    # never cross graphs, rows [i*TM, (i+1)*TM) only see columns of the graphs they touch.
    row_lo = jnp.arange(nrt, dtype=jnp.int32) * TM
    row_hi = jnp.minimum(row_lo + TM, N) - 1
    g_lo = batch[jnp.minimum(row_lo, N - 1)]
    g_hi = batch[row_hi]
    col_lo = offsets[g_lo]
    col_hi = offsets[g_hi] + counts[g_hi]
    kstart = (col_lo // TK).astype(jnp.int32)
    kend = ((col_hi + TK - 1) // TK).astype(jnp.int32)
    kcnt = jnp.maximum(kend - kstart, 1).astype(jnp.int32)
    k_iota = jnp.arange(kmax, dtype=jnp.int32)
    kidx = (kstart[:, None]
            + jnp.minimum(k_iota[None, :], kcnt[:, None] - 1)).astype(jnp.int32)

    # --- BN affine parameters, lane-padded (gamma pads to 1 so padded channels stay 0) ---
    g1 = jnp.ones((1, h_p), jnp.float32).at[0, :hidden].set(params["g1"])
    be1 = jnp.zeros((1, h_p), jnp.float32).at[0, :hidden].set(params["be1"])
    g2 = jnp.ones((1, o_p), jnp.float32).at[0, :dout].set(params["g2"])
    be2 = jnp.zeros((1, o_p), jnp.float32).at[0, :dout].set(params["be2"])

    # NOTE: the GCNConv biases are dropped on purpose: train-mode BatchNorm subtracts the
    # batch mean, so a per-channel constant shift cancels exactly (kept only in the ref).

    # --- layer 1: hoisted XW1 = (D^-1/2 X) @ W1 in f32, bf16 into the kernel ---
    xw1 = jnp.zeros((np_, h_p), jnp.float32).at[:N, :hidden].set(
        (x * dinv[:, None]) @ params["w1"]).astype(jnp.bfloat16)
    h1 = _gcn_bn_relu_layer(a_plus_i, xw1, dinv_col, kidx, kcnt, g1, be1, N,
                            jnp.bfloat16)

    # --- layer 2: XW2 = (D^-1/2 h1) @ W2 (dinv_pad zeroes padded-node rows) ---
    w2_pad = jnp.zeros((h_p, o_p), jnp.float32).at[:hidden, :dout].set(params["w2"])
    xw2 = ((h1.astype(jnp.float32) * dinv_pad[:, None]) @ w2_pad).astype(jnp.bfloat16)
    h2 = _gcn_bn_relu_layer(a_plus_i, xw2, dinv_col, kidx, kcnt, g2, be2, N,
                            jnp.float32)

    # --- glue: to_dense_batch + slice to 2111 + pad (masked contiguous gather),
    #     gathered on the lane-dense padded output, channel slice last ---
    pos = jnp.arange(MAX_NODES, dtype=jnp.int32)
    idx = jnp.clip(offsets[:, None] + pos[None, :], 0, N - 1)       # (B, 2111)
    valid = pos[None, :] < counts[:, None]
    dense = jnp.take(h2, idx, axis=0)                               # (B, 2111, o_p)
    dense = jnp.where(valid[:, :, None], dense, 0.0)
    return dense[:, :, :dout]


# --------------------------------------------------------------------------
# Pure-JAX reference (same semantics, f32, unfused, bias included).
# --------------------------------------------------------------------------
def _reference_forward(x, edge_index, batch, params, *, num_graphs):
    N = x.shape[0]
    src, dst = edge_index[0], edge_index[1]
    adj = jnp.zeros((N, N), jnp.float32).at[dst, src].add(1.0) + jnp.eye(N)
    deg = adj.sum(1)
    dinv = jnp.where(deg > 0, deg ** -0.5, 0.0)
    a = adj * dinv[:, None] * dinv[None, :]

    def layer(h, w, b, g, be):
        z = a @ (h @ w) + b
        mean = z.mean(0)
        var = ((z - mean) ** 2).mean(0)
        return jnp.maximum((z - mean) / jnp.sqrt(var + BN_EPS) * g + be, 0.0)

    h1 = layer(x, params["w1"], params["b1"], params["g1"], params["be1"])
    h2 = layer(h1, params["w2"], params["b2"], params["g2"], params["be2"])
    counts = jnp.bincount(batch, length=num_graphs)
    offsets = jnp.concatenate([jnp.zeros((1,), counts.dtype), jnp.cumsum(counts)[:-1]])
    pos = jnp.arange(MAX_NODES, dtype=jnp.int32)
    idx = jnp.clip(offsets[:, None] + pos[None, :], 0, N - 1)
    valid = pos[None, :] < counts[:, None]
    return jnp.where(valid[:, :, None], jnp.take(h2, idx, axis=0), 0.0)


def init_params(key, input_dim, hidden_dim, output_dim):
    ks = jax.random.split(key, 8)
    s1 = (6.0 / (input_dim + hidden_dim)) ** 0.5
    s2 = (6.0 / (hidden_dim + output_dim)) ** 0.5
    return {
        "w1": jax.random.uniform(ks[0], (input_dim, hidden_dim), jnp.float32, -s1, s1),
        "b1": 0.1 * jax.random.normal(ks[1], (hidden_dim,), jnp.float32),
        "g1": 1.0 + 0.2 * jax.random.normal(ks[2], (hidden_dim,), jnp.float32),
        "be1": 0.1 * jax.random.normal(ks[3], (hidden_dim,), jnp.float32),
        "w2": jax.random.uniform(ks[4], (hidden_dim, output_dim), jnp.float32, -s2, s2),
        "b2": 0.1 * jax.random.normal(ks[5], (output_dim,), jnp.float32),
        "g2": 1.0 + 0.2 * jax.random.normal(ks[6], (output_dim,), jnp.float32),
        "be2": 0.1 * jax.random.normal(ks[7], (output_dim,), jnp.float32),
    }


if __name__ == "__main__":
    key = jax.random.PRNGKey(0)
    input_dim, hidden_dim, output_dim = 16, 32, 32   # output_dim == hidden_dim (bn2 shape)
    graph_sizes = [120, 200, 90, 150, 40]            # 600 nodes -> np_=768, 3 row tiles
    num_graphs = len(graph_sizes)
    N = sum(graph_sizes)

    kx, kp = jax.random.split(key)
    x = jax.random.normal(kx, (N, input_dim), jnp.float32)

    # simple undirected ring per graph (edges stored in both directions)
    srcs, dsts = [], []
    base = 0
    for sz in graph_sizes:
        for i in range(sz):
            a, b = base + i, base + (i + 1) % sz
            srcs += [a, b]
            dsts += [b, a]
        base += sz
    edge_index = jnp.array([srcs, dsts], dtype=jnp.int32)
    batch = jnp.concatenate([jnp.full((sz,), g, jnp.int32)
                             for g, sz in enumerate(graph_sizes)])

    params = init_params(kp, input_dim, hidden_dim, output_dim)

    fwd = jax.jit(functools.partial(protein_module_forward, num_graphs=num_graphs))
    out = jax.block_until_ready(fwd(x, edge_index, batch, params))
    assert out.shape == (num_graphs, MAX_NODES, output_dim), out.shape

    ref = _reference_forward(x, edge_index, batch, params, num_graphs=num_graphs)
    err = float(jnp.max(jnp.abs(out - ref)))
    assert err < 0.1, f"max abs err vs reference too large: {err}"
    print("KERNEL_OK")
</pallas_src>

<mosaic_0001>
module attributes {stable_mosaic.version = 11 : i64} {
  func.func @_bn_relu_kernel(%arg0: i32, %arg1: memref<256x128xf32, #tpu.memory_space<vmem>>, %arg2: memref<2x128xf32, #tpu.memory_space<vmem>>, %arg3: memref<1x128xf32, #tpu.memory_space<vmem>>, %arg4: memref<1x128xf32, #tpu.memory_space<vmem>>, %arg5: memref<256x128xbf16, #tpu.memory_space<vmem>>) attributes {dimension_semantics = [#tpu.dimension_semantics<parallel>], iteration_bounds = array<i64: 3>, scalar_prefetch = 0 : i64, scratch_operands = 0 : i64, tpu.core_type = #tpu.core_type<tc>, window_params = [{transform_indices = @transform_0, window_bounds = array<i64: 256, 128>}, {pipeline_mode = #tpu.pipeline_mode<synchronous>, transform_indices = @transform_1, window_bounds = array<i64: 2, 128>}, {pipeline_mode = #tpu.pipeline_mode<synchronous>, transform_indices = @transform_2, window_bounds = array<i64: 1, 128>}, {pipeline_mode = #tpu.pipeline_mode<synchronous>, transform_indices = @transform_3, window_bounds = array<i64: 1, 128>}, {transform_indices = @transform_4, window_bounds = array<i64: 256, 128>}]} {
    %c0 = arith.constant 0 : index
    %c0_0 = arith.constant 0 : index
    %0 = vector.load %arg1[%c0, %c0_0] : memref<256x128xf32, #tpu.memory_space<vmem>>, vector<256x128xf32>
    %c0_1 = arith.constant 0 : index
    %c0_2 = arith.constant 0 : index
    %1 = vector.load %arg2[%c0_1, %c0_2] : memref<2x128xf32, #tpu.memory_space<vmem>>, vector<1x128xf32>
    %cst = arith.constant 0.00166666671 : f32
    %2 = vector.broadcast %cst : f32 to vector<1x128xf32>
    %3 = arith.mulf %1, %2 : vector<1x128xf32>
    %c1 = arith.constant 1 : index
    %c0_3 = arith.constant 0 : index
    %4 = vector.load %arg2[%c1, %c0_3] : memref<2x128xf32, #tpu.memory_space<vmem>>, vector<1x128xf32>
    %cst_4 = arith.constant 0.00166666671 : f32
    %5 = vector.broadcast %cst_4 : f32 to vector<1x128xf32>
    %6 = arith.mulf %4, %5 : vector<1x128xf32>
    %7 = arith.mulf %3, %3 : vector<1x128xf32>
    %8 = arith.subf %6, %7 : vector<1x128xf32>
    %cst_5 = arith.constant 9.99999974E-6 : f32
    %9 = vector.broadcast %cst_5 : f32 to vector<1x128xf32>
    %10 = arith.addf %8, %9 : vector<1x128xf32>
    %11 = math.rsqrt %10 : vector<1x128xf32>
    %12 = vector.broadcast %3 : vector<1x128xf32> to vector<256x128xf32>
    %13 = arith.subf %0, %12 : vector<256x128xf32>
    %c0_6 = arith.constant 0 : index
    %c0_7 = arith.constant 0 : index
    %14 = vector.load %arg3[%c0_6, %c0_7] : memref<1x128xf32, #tpu.memory_space<vmem>>, vector<1x128xf32>
    %15 = arith.mulf %11, %14 : vector<1x128xf32>
    %16 = vector.broadcast %15 : vector<1x128xf32> to vector<256x128xf32>
    %17 = arith.mulf %13, %16 : vector<256x128xf32>
    %c0_8 = arith.constant 0 : index
    %c0_9 = arith.constant 0 : index
    %18 = vector.load %arg4[%c0_8, %c0_9] : memref<1x128xf32, #tpu.memory_space<vmem>>, vector<1x128xf32>
    %19 = vector.broadcast %18 : vector<1x128xf32> to vector<256x128xf32>
    %20 = arith.addf %17, %19 : vector<256x128xf32>
    %cst_10 = arith.constant 0.000000e+00 : f32
    %21 = vector.broadcast %cst_10 : f32 to vector<256x128xf32>
    %22 = arith.maximumf %20, %21 : vector<256x128xf32>
    %23 = arith.truncf %22 : vector<256x128xf32> to vector<256x128xbf16>
    %c0_11 = arith.constant 0 : index
    %c0_12 = arith.constant 0 : index
    %24 = vector.load %arg5[%c0_11, %c0_12] : memref<256x128xbf16, #tpu.memory_space<vmem>>, vector<256x128xbf16>
    tpu.vector_store %arg5[%c0_11, %c0_12], %23 {strides = array<i32>} : memref<256x128xbf16, #tpu.memory_space<vmem>>, vector<256x128xbf16>,
    return
  }
  func.func @transform_0(%arg0: i32) -> (i32, i32) {
    %c0_i32 = arith.constant 0 : i32
    %c0_i32_0 = arith.constant 0 : i32
    return %arg0, %c0_i32 : i32, i32
  }
  func.func @transform_1(%arg0: i32) -> (i32, i32) {
    %c0_i32 = arith.constant 0 : i32
    %c0_i32_0 = arith.constant 0 : i32
    %c0_i32_1 = arith.constant 0 : i32
    return %c0_i32, %c0_i32_0 : i32, i32
  }
  func.func @transform_2(%arg0: i32) -> (i32, i32) {
    %c0_i32 = arith.constant 0 : i32
    %c0_i32_0 = arith.constant 0 : i32
    %c0_i32_1 = arith.constant 0 : i32
    return %c0_i32, %c0_i32_0 : i32, i32
  }
  func.func @transform_3(%arg0: i32) -> (i32, i32) {
    %c0_i32 = arith.constant 0 : i32
    %c0_i32_0 = arith.constant 0 : i32
    %c0_i32_1 = arith.constant 0 : i32
    return %c0_i32, %c0_i32_0 : i32, i32
  }
  func.func @transform_4(%arg0: i32) -> (i32, i32) {
    %c0_i32 = arith.constant 0 : i32
    %c0_i32_0 = arith.constant 0 : i32
    return %arg0, %c0_i32 : i32, i32
  }
}

module attributes {stable_mosaic.version = 11 : i64} {
  func.func @_gcn_z_kernel(%arg0: i32, %arg1: i32, %arg2: memref<3x3xi32, #tpu.memory_space<smem>>, %arg3: memref<3xi32, #tpu.memory_space<smem>>, %arg4: memref<256x256xbf16, #tpu.memory_space<vmem>>, %arg5: memref<256x128xbf16, #tpu.memory_space<vmem>>, %arg6: memref<256x1xf32, #tpu.memory_space<vmem>>, %arg7: memref<256x128xf32, #tpu.memory_space<vmem>>, %arg8: memref<1x2x128xf32, #tpu.memory_space<vmem>>, %arg9: memref<256x128xf32, #tpu.memory_space<vmem>>) attributes {dimension_semantics = [#tpu.dimension_semantics<parallel>, #tpu.dimension_semantics<arbitrary>], iteration_bounds = array<i64: 3, 3>, scalar_prefetch = 2 : i64, scratch_operands = 1 : i64, tpu.core_type = #tpu.core_type<tc>, window_params = [{transform_indices = @transform_0, window_bounds = array<i64: 256, 256>}, {transform_indices = @transform_1, window_bounds = array<i64: 256, 128>}, {transform_indices = @transform_2, window_bounds = array<i64: 256, 1>}, {transform_indices = @transform_3, window_bounds = array<i64: 256, 128>}, {transform_indices = @transform_4, window_bounds = array<i64: 1, 2, 128>}]} {
    %c0_i32 = arith.constant 0 : i32
    %0 = arith.cmpi eq, %arg1, %c0_i32 : i32
    %1 = arith.extui %0 : i1 to i32
    %c0_i32_0 = arith.constant 0 : i32
    %2 = arith.cmpi ne, %1, %c0_i32_0 : i32
    scf.if %2 {
      %cst = arith.constant 0.000000e+00 : f32
      %11 = vector.broadcast %cst : f32 to vector<256x128xf32>
      %c0 = arith.constant 0 : index
      %c0_3 = arith.constant 0 : index
      %12 = vector.load %arg9[%c0, %c0_3] : memref<256x128xf32, #tpu.memory_space<vmem>>, vector<256x128xf32>
      tpu.vector_store %arg9[%c0, %c0_3], %11 {strides = array<i32>} : memref<256x128xf32, #tpu.memory_space<vmem>>, vector<256x128xf32>,
    } else {
    }
    %3 = arith.index_cast %arg0 : i32 to index
    %4 = memref.load %arg3[%3] : memref<3xi32, #tpu.memory_space<smem>>
    %5 = arith.cmpi slt, %arg1, %4 : i32
    %6 = arith.extui %5 : i1 to i32
    %c0_i32_1 = arith.constant 0 : i32
    %7 = arith.cmpi ne, %6, %c0_i32_1 : i32
    scf.if %7 {
      %c0 = arith.constant 0 : index
      %c0_3 = arith.constant 0 : index
      %11 = vector.load %arg9[%c0, %c0_3] : memref<256x128xf32, #tpu.memory_space<vmem>>, vector<256x128xf32>
      %c0_4 = arith.constant 0 : index
      %c0_5 = arith.constant 0 : index
      %12 = vector.load %arg4[%c0_4, %c0_5] : memref<256x256xbf16, #tpu.memory_space<vmem>>, vector<256x256xbf16>
      %c0_6 = arith.constant 0 : index
      %c0_7 = arith.constant 0 : index
      %13 = vector.load %arg5[%c0_6, %c0_7] : memref<256x128xbf16, #tpu.memory_space<vmem>>, vector<256x128xbf16>
      %cst = arith.constant dense<0.000000e+00> : vector<256x128xf32>
      %14 = tpu.matmul %12, %13, %cst {dimension_numbers = #tpu.dot_dimension_numbers<[1], [0], [0], [1], [0, 0, 1, 1], [], []>} : vector<256x256xbf16>, vector<256x128xbf16>, vector<256x128xf32> -> vector<256x128xf32>
      %15 = arith.addf %11, %14 : vector<256x128xf32>
      %c0_8 = arith.constant 0 : index
      %c0_9 = arith.constant 0 : index
      %16 = vector.load %arg9[%c0_8, %c0_9] : memref<256x128xf32, #tpu.memory_space<vmem>>, vector<256x128xf32>
      tpu.vector_store %arg9[%c0_8, %c0_9], %15 {strides = array<i32>} : memref<256x128xf32, #tpu.memory_space<vmem>>, vector<256x128xf32>,
    } else {
    }
    %c2_i32 = arith.constant 2 : i32
    %8 = arith.cmpi eq, %arg1, %c2_i32 : i32
    %9 = arith.extui %8 : i1 to i32
    %c0_i32_2 = arith.constant 0 : i32
    %10 = arith.cmpi ne, %9, %c0_i32_2 : i32
    scf.if %10 {
      %c0 = arith.constant 0 : index
      %c0_3 = arith.constant 0 : index
      %11 = vector.load %arg6[%c0, %c0_3] : memref<256x1xf32, #tpu.memory_space<vmem>>, vector<256x1xf32>
      %c0_4 = arith.constant 0 : index
      %c0_5 = arith.constant 0 : index
      %12 = vector.load %arg9[%c0_4, %c0_5] : memref<256x128xf32, #tpu.memory_space<vmem>>, vector<256x128xf32>
      %13 = vector.broadcast %11 : vector<256x1xf32> to vector<256x128xf32>
      %14 = arith.mulf %13, %12 : vector<256x128xf32>
      %c0_6 = arith.constant 0 : index
      %c0_7 = arith.constant 0 : index
      %15 = vector.load %arg7[%c0_6, %c0_7] : memref<256x128xf32, #tpu.memory_space<vmem>>, vector<256x128xf32>
      tpu.vector_store %arg7[%c0_6, %c0_7], %14 {strides = array<i32>} : memref<256x128xf32, #tpu.memory_space<vmem>>, vector<256x128xf32>,
      %cst = arith.constant dense<0.000000e+00> : vector<128xf32>
      %16 = vector.multi_reduction <add>, %14, %cst [0] : vector<256x128xf32> to vector<128xf32>
      %17 = vector.shape_cast %16 : vector<128xf32> to vector<1x128xf32>
      %18 = arith.mulf %14, %14 : vector<256x128xf32>
      %cst_8 = arith.constant dense<0.000000e+00> : vector<128xf32>
      %19 = vector.multi_reduction <add>, %18, %cst_8 [0] : vector<256x128xf32> to vector<128xf32>
      %20 = vector.shape_cast %19 : vector<128xf32> to vector<1x128xf32>
      %21 = tpu.concatenate %17, %20 in 0 : vector<1x128xf32>, vector<1x128xf32> -> vector<2x128xf32>
      %22 = vector.shape_cast %21 : vector<2x128xf32> to vector<1x2x128xf32>
      %c0_9 = arith.constant 0 : index
      %c0_10 = arith.constant 0 : index
      %c0_11 = arith.constant 0 : index
      %23 = vector.load %arg8[%c0_9, %c0_10, %c0_11] : memref<1x2x128xf32, #tpu.memory_space<vmem>>, vector<1x2x128xf32>
      tpu.vector_store %arg8[%c0_9, %c0_10, %c0_11], %22 {strides = array<i32>} : memref<1x2x128xf32, #tpu.memory_space<vmem>>, vector<1x2x128xf32>,
    } else {
    }
    return
  }
  func.func @transform_0(%arg0: i32, %arg1: i32, %arg2: memref<3x3xi32, #tpu.memory_space<smem>>, %arg3: memref<3xi32, #tpu.memory_space<smem>>) -> (i32, i32) {
    %0 = arith.index_cast %arg0 : i32 to index
    %1 = arith.index_cast %arg1 : i32 to index
    %2 = memref.load %arg2[%0, %1] : memref<3x3xi32, #tpu.memory_space<smem>>
    %c0_i32 = arith.constant 0 : i32
    return %arg0, %2 : i32, i32
  }
  func.func @transform_1(%arg0: i32, %arg1: i32, %arg2: memref<3x3xi32, #tpu.memory_space<smem>>, %arg3: memref<3xi32, #tpu.memory_space<smem>>) -> (i32, i32) {
    %0 = arith.index_cast %arg0 : i32 to index
    %1 = arith.index_cast %arg1 : i32 to index
    %2 = memref.load %arg2[%0, %1] : memref<3x3xi32, #tpu.memory_space<smem>>
    %c0_i32 = arith.constant 0 : i32
    %c0_i32_0 = arith.constant 0 : i32
    return %2, %c0_i32 : i32, i32
  }
  func.func @transform_2(%arg0: i32, %arg1: i32, %arg2: memref<3x3xi32, #tpu.memory_space<smem>>, %arg3: memref<3xi32, #tpu.memory_space<smem>>) -> (i32, i32) {
    %c0_i32 = arith.constant 0 : i32
    %c0_i32_0 = arith.constant 0 : i32
    return %arg0, %c0_i32 : i32, i32
  }
  func.func @transform_3(%arg0: i32, %arg1: i32, %arg2: memref<3x3xi32, #tpu.memory_space<smem>>, %arg3: memref<3xi32, #tpu.memory_space<smem>>) -> (i32, i32) {
    %c0_i32 = arith.constant 0 : i32
    %c0_i32_0 = arith.constant 0 : i32
    return %arg0, %c0_i32 : i32, i32
  }
  func.func @transform_4(%arg0: i32, %arg1: i32, %arg2: memref<3x3xi32, #tpu.memory_space<smem>>, %arg3: memref<3xi32, #tpu.memory_space<smem>>) -> (i32, i32, i32) {
    %c0_i32 = arith.constant 0 : i32
    %c0_i32_0 = arith.constant 0 : i32
    %c0_i32_1 = arith.constant 0 : i32
    return %arg0, %c0_i32, %c0_i32_0 : i32, i32, i32
  }
}

module attributes {stable_mosaic.version = 11 : i64} {
  func.func @_bn_relu_kernel(%arg0: i32, %arg1: memref<256x128xf32, #tpu.memory_space<vmem>>, %arg2: memref<2x128xf32, #tpu.memory_space<vmem>>, %arg3: memref<1x128xf32, #tpu.memory_space<vmem>>, %arg4: memref<1x128xf32, #tpu.memory_space<vmem>>, %arg5: memref<256x128xf32, #tpu.memory_space<vmem>>) attributes {dimension_semantics = [#tpu.dimension_semantics<parallel>], iteration_bounds = array<i64: 3>, scalar_prefetch = 0 : i64, scratch_operands = 0 : i64, tpu.core_type = #tpu.core_type<tc>, window_params = [{transform_indices = @transform_0, window_bounds = array<i64: 256, 128>}, {pipeline_mode = #tpu.pipeline_mode<synchronous>, transform_indices = @transform_1, window_bounds = array<i64: 2, 128>}, {pipeline_mode = #tpu.pipeline_mode<synchronous>, transform_indices = @transform_2, window_bounds = array<i64: 1, 128>}, {pipeline_mode = #tpu.pipeline_mode<synchronous>, transform_indices = @transform_3, window_bounds = array<i64: 1, 128>}, {transform_indices = @transform_4, window_bounds = array<i64: 256, 128>}]} {
    %c0 = arith.constant 0 : index
    %c0_0 = arith.constant 0 : index
    %0 = vector.load %arg1[%c0, %c0_0] : memref<256x128xf32, #tpu.memory_space<vmem>>, vector<256x128xf32>
    %c0_1 = arith.constant 0 : index
    %c0_2 = arith.constant 0 : index
    %1 = vector.load %arg2[%c0_1, %c0_2] : memref<2x128xf32, #tpu.memory_space<vmem>>, vector<1x128xf32>
    %cst = arith.constant 0.00166666671 : f32
    %2 = vector.broadcast %cst : f32 to vector<1x128xf32>
    %3 = arith.mulf %1, %2 : vector<1x128xf32>
    %c1 = arith.constant 1 : index
    %c0_3 = arith.constant 0 : index
    %4 = vector.load %arg2[%c1, %c0_3] : memref<2x128xf32, #tpu.memory_space<vmem>>, vector<1x128xf32>
    %cst_4 = arith.constant 0.00166666671 : f32
    %5 = vector.broadcast %cst_4 : f32 to vector<1x128xf32>
    %6 = arith.mulf %4, %5 : vector<1x128xf32>
    %7 = arith.mulf %3, %3 : vector<1x128xf32>
    %8 = arith.subf %6, %7 : vector<1x128xf32>
    %cst_5 = arith.constant 9.99999974E-6 : f32
    %9 = vector.broadcast %cst_5 : f32 to vector<1x128xf32>
    %10 = arith.addf %8, %9 : vector<1x128xf32>
    %11 = math.rsqrt %10 : vector<1x128xf32>
    %12 = vector.broadcast %3 : vector<1x128xf32> to vector<256x128xf32>
    %13 = arith.subf %0, %12 : vector<256x128xf32>
    %c0_6 = arith.constant 0 : index
    %c0_7 = arith.constant 0 : index
    %14 = vector.load %arg3[%c0_6, %c0_7] : memref<1x128xf32, #tpu.memory_space<vmem>>, vector<1x128xf32>
    %15 = arith.mulf %11, %14 : vector<1x128xf32>
    %16 = vector.broadcast %15 : vector<1x128xf32> to vector<256x128xf32>
    %17 = arith.mulf %13, %16 : vector<256x128xf32>
    %c0_8 = arith.constant 0 : index
    %c0_9 = arith.constant 0 : index
    %18 = vector.load %arg4[%c0_8, %c0_9] : memref<1x128xf32, #tpu.memory_space<vmem>>, vector<1x128xf32>
    %19 = vector.broadcast %18 : vector<1x128xf32> to vector<256x128xf32>
    %20 = arith.addf %17, %19 : vector<256x128xf32>
    %cst_10 = arith.constant 0.000000e+00 : f32
    %21 = vector.broadcast %cst_10 : f32 to vector<256x128xf32>
    %22 = arith.maximumf %20, %21 : vector<256x128xf32>
    %c0_11 = arith.constant 0 : index
    %c0_12 = arith.constant 0 : index
    %23 = vector.load %arg5[%c0_11, %c0_12] : memref<256x128xf32, #tpu.memory_space<vmem>>, vector<256x128xf32>
    tpu.vector_store %arg5[%c0_11, %c0_12], %22 {strides = array<i32>} : memref<256x128xf32, #tpu.memory_space<vmem>>, vector<256x128xf32>,
    return
  }
  func.func @transform_0(%arg0: i32) -> (i32, i32) {
    %c0_i32 = arith.constant 0 : i32
    %c0_i32_0 = arith.constant 0 : i32
    return %arg0, %c0_i32 : i32, i32
  }
  func.func @transform_1(%arg0: i32) -> (i32, i32) {
    %c0_i32 = arith.constant 0 : i32
    %c0_i32_0 = arith.constant 0 : i32
    %c0_i32_1 = arith.constant 0 : i32
    return %c0_i32, %c0_i32_0 : i32, i32
  }
  func.func @transform_2(%arg0: i32) -> (i32, i32) {
    %c0_i32 = arith.constant 0 : i32
    %c0_i32_0 = arith.constant 0 : i32
    %c0_i32_1 = arith.constant 0 : i32
    return %c0_i32, %c0_i32_0 : i32, i32
  }
  func.func @transform_3(%arg0: i32) -> (i32, i32) {
    %c0_i32 = arith.constant 0 : i32
    %c0_i32_0 = arith.constant 0 : i32
    %c0_i32_1 = arith.constant 0 : i32
    return %c0_i32, %c0_i32_0 : i32, i32
  }
  func.func @transform_4(%arg0: i32) -> (i32, i32) {
    %c0_i32 = arith.constant 0 : i32
    %c0_i32_0 = arith.constant 0 : i32
    return %arg0, %c0_i32 : i32, i32
  }
}

</mosaic_0001>

<llo_original>
// kernel: protein_module_forward.5
$region0: #{protein_module_forward.5}
  #allocation0 [shape = 'u32[]', space=smem, size = 0x4, offset = 0x4, fixed_abs, tag = 'smem constant byte address 0x4 - core index']
  #allocation1 [shape = 'u32[72,128]{1,0:T(1,128)}', space=vmem, size = 0x9000, scoped, tag = 'internal scratch']
  %s0 = inlined_call_operand.vmem [shape: f32[768,128], index: 0, kind: input, shape index: {}]
  %s1 = inlined_call_operand.vmem [shape: f32[2,128], index: 1, kind: input, shape index: {}]
  %s2 = inlined_call_operand.vmem [shape: f32[1,128], index: 2, kind: input, shape index: {}]
  %s3 = inlined_call_operand.vmem [shape: f32[1,128], index: 3, kind: input, shape index: {}]
  %s4 = inlined_call_operand.vmem [shape: bf16[768,128], index: 4, kind: output, shape index: {}]
  %s5 = sld [smem:[#allocation0]]
  $region49: #{protein_module_forward.5} parent=0
    _
  %s7 = ssub.s32 1, %s5
  %s8 = scalar_select 0, %s7, %s5
  loop: start=0, step=1, limit=5
  $region2: #{protein_module_forward.5} parent=0 // loop_pre_header
    _
  $region3: #{protein_module_forward.5} parent=0 // loop_header
    %s10 = sphi 0, %s14
    %p11 = scmp.ge.s32.totalorder %s10, 5
    %s20 = sphi 0, %s22
    %s23 = sphi 0, %s20
    %s24 = sphi 0, %s23
    %s40 = sphi 0, %s24
    %s44 = sphi 0, %s44
    %s46 = sphi 0, %s44
    %s47 = sphi 0, %s46
    %s61 = sphi 0, %s47
    %s65 = sphi 0, %s65
    %s67 = sphi 0, %s65
    %s68 = sphi 0, %s67
    %s82 = sphi 0, %s68
    %s86 = sphi 0, %s86
    %s88 = sphi 0, %s86
    %s89 = sphi 0, %s88
    %s103 = sphi 0, %s89
    %s109 = sphi 0, %s111
    %s112 = sphi 0, %s109
    %s113 = sphi 0, %s112
    %s129 = sphi 0, %s113
  $region4: #{protein_module_forward.5} parent=0 // loop_header_branch
    %13 = sbr.rel (%p11) target = $region8
  $region5: #{protein_module_forward.5} parent=0 // loop_body
    %s15 = ssub.s32 %s10, 1
    %s16 = ssub.s32 %s10, 2
    %s17 = sadd.s32 %s10, 1
    %s18 = ssub.s32 %s10, %s17
    %p19 = scmp.eq.s32.totalorder %s18, 0
    %s21 = sadd.s32 %s20, 1
    %s22 = scalar_select %p19, %s20, %s21
    %p25 = pneg %p19
    %p26 = scmp.eq.s32.totalorder %s10, 2
    %p27 = por %p25, %p26
    %p28 = scmp.ne.s32.totalorder %s20, %s23
    %p29 = scmp.eq.s32.totalorder %s10, 0
    %p30 = por %p28, %p29
    %p31 = scmp.ne.s32.totalorder %s20, %s23
    %p32 = scmp.eq.s32.totalorder %s15, 2
    %p33 = por %p31, %p32
    %p34 = scmp.ne.s32.totalorder %s23, %s24
    %p35 = scmp.eq.s32.totalorder %s15, 0
    %p36 = por %p34, %p35
    %p37 = scmp.ne.s32.totalorder %s23, %s24
    %p38 = scmp.eq.s32.totalorder %s16, 2
    %p39 = por %p37, %p38
    %p41 = scmp.ne.s32.totalorder %s24, %s40
    %p42 = scmp.eq.s32.totalorder %s16, 0
    %p43 = por %p41, %p42
    %s45 = sadd.s32 %s44, 1
    %p48 = scmp.eq.s32.totalorder %s10, 2
    %p49 = scmp.ne.s32.totalorder %s44, %s46
    %p50 = scmp.eq.s32.totalorder %s10, 0
    %p51 = por %p49, %p50
    %p52 = scmp.ne.s32.totalorder %s44, %s46
    %p53 = scmp.eq.s32.totalorder %s15, 2
    %p54 = por %p52, %p53
    %p55 = scmp.ne.s32.totalorder %s46, %s47
    %p56 = scmp.eq.s32.totalorder %s15, 0
    %p57 = por %p55, %p56
    %p58 = scmp.ne.s32.totalorder %s46, %s47
    %p59 = scmp.eq.s32.totalorder %s16, 2
    %p60 = por %p58, %p59
    %p62 = scmp.ne.s32.totalorder %s47, %s61
    %p63 = scmp.eq.s32.totalorder %s16, 0
    %p64 = por %p62, %p63
    %s66 = sadd.s32 %s65, 1
    %p69 = scmp.eq.s32.totalorder %s10, 2
    %p70 = scmp.ne.s32.totalorder %s65, %s67
    %p71 = scmp.eq.s32.totalorder %s10, 0
    %p72 = por %p70, %p71
    %p73 = scmp.ne.s32.totalorder %s65, %s67
    %p74 = scmp.eq.s32.totalorder %s15, 2
    %p75 = por %p73, %p74
    %p76 = scmp.ne.s32.totalorder %s67, %s68
    %p77 = scmp.eq.s32.totalorder %s15, 0
    %p78 = por %p76, %p77
    %p79 = scmp.ne.s32.totalorder %s67, %s68
    %p80 = scmp.eq.s32.totalorder %s16, 2
    %p81 = por %p79, %p80
    %p83 = scmp.ne.s32.totalorder %s68, %s82
    %p84 = scmp.eq.s32.totalorder %s16, 0
    %p85 = por %p83, %p84
    %s87 = sadd.s32 %s86, 1
    %p90 = scmp.eq.s32.totalorder %s10, 2
    %p91 = scmp.ne.s32.totalorder %s86, %s88
    %p92 = scmp.eq.s32.totalorder %s10, 0
    %p93 = por %p91, %p92
    %p94 = scmp.ne.s32.totalorder %s86, %s88
    %p95 = scmp.eq.s32.totalorder %s15, 2
    %p96 = por %p94, %p95
    %p97 = scmp.ne.s32.totalorder %s88, %s89
    %p98 = scmp.eq.s32.totalorder %s15, 0
    %p99 = por %p97, %p98
    %p100 = scmp.ne.s32.totalorder %s88, %s89
    %p101 = scmp.eq.s32.totalorder %s16, 2
    %p102 = por %p100, %p101
    %p104 = scmp.ne.s32.totalorder %s89, %s103
    %p105 = scmp.eq.s32.totalorder %s16, 0
    %p106 = por %p104, %p105
    %s107 = ssub.s32 %s10, %s17
    %p108 = scmp.eq.s32.totalorder %s107, 0
    %s110 = sadd.s32 %s109, 1
    %s111 = scalar_select %p108, %s109, %s110
    %p114 = pneg %p108
    %p115 = scmp.eq.s32.totalorder %s10, 2
    %p116 = por %p114, %p115
    %p117 = scmp.ne.s32.totalorder %s109, %s112
    %p118 = scmp.eq.s32.totalorder %s10, 0
    %p119 = por %p117, %p118
    %p120 = scmp.ne.s32.totalorder %s109, %s112
    %p121 = scmp.eq.s32.totalorder %s15, 2
    %p122 = por %p120, %p121
    %p123 = scmp.ne.s32.totalorder %s112, %s113
    %p124 = scmp.eq.s32.totalorder %s15, 0
    %p125 = por %p123, %p124
    %p126 = scmp.ne.s32.totalorder %s112, %s113
    %p127 = scmp.eq.s32.totalorder %s16, 2
    %p128 = por %p126, %p127
    %p130 = scmp.ne.s32.totalorder %s113, %s129
    %p131 = scmp.eq.s32.totalorder %s16, 0
    %p132 = por %p130, %p131
    %p133 = scmp.le.s32.totalorder 1, %s10
    %p134 = scmp.lt.s32.totalorder %s10, 4
    %p135 = pnand %p133, %p134
    %p136 = pneg %p135
    // Predicated region
    $region9: #{protein_module_forward.5} parent=5 // pred_check
      _
    $region10: #{protein_module_forward.5} parent=5 // pred_check_branch
      %138 = sbr.rel (%p135) target = $region12
    $region11: #{protein_module_forward.5} parent=5 // pred_region
      %s139 = ssub.s32 %s10, 1
      // Predicated region
      $region13: #{protein_module_forward.5} parent=11 // pred_check
        %p140 = pneg %p57
      $region14: #{protein_module_forward.5} parent=11 // pred_check_branch
        %142 = sbr.rel (%p140) target = $region16
      $region15: #{protein_module_forward.5} parent=11 // pred_region
        _
      $region16: #{protein_module_forward.5} parent=11 // pred_fallthru
        _
      // Predicated region
      $region17: #{protein_module_forward.5} parent=11 // pred_check
        %p143 = pneg %p78
      $region18: #{protein_module_forward.5} parent=11 // pred_check_branch
        %145 = sbr.rel (%p143) target = $region20
      $region19: #{protein_module_forward.5} parent=11 // pred_region
        _
      $region20: #{protein_module_forward.5} parent=11 // pred_fallthru
        _
      // Predicated region
      $region21: #{protein_module_forward.5} parent=11 // pred_check
        %p146 = pneg %p99
      $region22: #{protein_module_forward.5} parent=11 // pred_check_branch
        %148 = sbr.rel (%p146) target = $region24
      $region23: #{protein_module_forward.5} parent=11 // pred_region
        _
      $region24: #{protein_module_forward.5} parent=11 // pred_fallthru
        _
    $region12: #{protein_module_forward.5} parent=5 // pred_fallthru
      _
    %p149 = scmp.lt.s32.totalorder %s10, 3
    // Predicated region
    $region25: #{protein_module_forward.5} parent=5 // pred_check
      %p150 = pneg %p149
    $region26: #{protein_module_forward.5} parent=5 // pred_check_branch
      %152 = sbr.rel (%p150) target = $region28
    $region27: #{protein_module_forward.5} parent=5 // pred_region
      // Predicated region
      $region29: #{protein_module_forward.5} parent=27 // pred_check
        %p153 = pneg %p30
      $region30: #{protein_module_forward.5} parent=27 // pred_check_branch
        %155 = sbr.rel (%p153) target = $region32
      $region31: #{protein_module_forward.5} parent=27 // pred_region
        %s156 = smul.u32 32, %s10
        %p157 = scmp.lt.s32.totalorder %s156, 95
        %s158 = scalar_select %p157, %s156, 95
        %s159 = smul.addr %s158, 8
        %s160 = scalar_lea.vmem %s0, %s159
        %s161 = smul.u32 32, %s10
      $region32: #{protein_module_forward.5} parent=27 // pred_fallthru
        _
    $region28: #{protein_module_forward.5} parent=5 // pred_fallthru
      _
    %p162 = scmp.le.s32.totalorder 1, %s10
    %p163 = scmp.lt.s32.totalorder %s10, 4
    %p164 = pnand %p162, %p163
    %p165 = pneg %p164
    // Predicated region
    $region33: #{protein_module_forward.5} parent=5 // pred_check
      _
    $region34: #{protein_module_forward.5} parent=5 // pred_check_branch
      %167 = sbr.rel (%p164) target = $region36
    $region35: #{protein_module_forward.5} parent=5 // pred_region
      %s168 = ssub.s32 %s10, 1
      %s169 = smul.u32 32, %s15
      %p170 = scmp.lt.s32.totalorder %s169, 95
      %s171 = scalar_select %p170, %s169, 95
      %s172 = smul.addr %s171, 8
      %s173 = scalar_lea.vmem %s0, %s172
      %p174 = pneg %p36
      %p175 = pneg %p33
      %p176 = pneg %p57
      %p177 = pneg %p54
      %p178 = pneg %p78
      %p179 = pneg %p75
      %p180 = pneg %p99
      %p181 = pneg %p96
      %p182 = pneg %p125
      %p183 = pneg %p122
      %s184 = smul.u32 32, %s15
      %p185 = scmp.lt.s32.totalorder %s184, 95
      %s186 = scalar_select %p185, %s184, 95
      %s187 = smul.addr %s186, 4
      %s188 = scalar_lea.vmem %s4, %s187
      %s189 = smul.u32 32, %s15
      %p190 = scmp.lt.s32.totalorder %s189, 95
      %s191 = scalar_select %p190, %s189, 95
      %s192 = smul.addr %s191, 8
      %s193 = scalar_lea.vmem %s0, %s192
      %s194 = smul.u32 32, %s15
      %s195 = smul.u32 32, %s15
      %p196 = scmp.lt.s32.totalorder %s195, 95
      %s197 = scalar_select %p196, %s195, 95
      %s198 = smul.addr %s197, 4
      %s199 = scalar_lea.vmem %s4, %s198
      %s200 = smul.u32 32, %s15
      %v201 = vld [vmem:[%s193] sm:$0xff]
      %v202 = vld [vmem:[%s193 + $0x8] sm:$0xff]
      %v203 = vld [vmem:[%s193 + $0x10] sm:$0xff]
      %v204 = vld [vmem:[%s193 + $0x18] sm:$0xff]
      %v205 = vld [vmem:[%s193 + $0x20] sm:$0xff]
      %v206 = vld [vmem:[%s193 + $0x28] sm:$0xff]
      %v207 = vld [vmem:[%s193 + $0x30] sm:$0xff]
      %v208 = vld [vmem:[%s193 + $0x38] sm:$0xff]
      %v209 = vld [vmem:[%s193 + $0x40] sm:$0xff]
      %v210 = vld [vmem:[%s193 + $0x48] sm:$0xff]
      %v211 = vld [vmem:[%s193 + $0x50] sm:$0xff]
      %v212 = vld [vmem:[%s193 + $0x58] sm:$0xff]
      %v213 = vld [vmem:[%s193 + $0x60] sm:$0xff]
      %v214 = vld [vmem:[%s193 + $0x68] sm:$0xff]
      %v215 = vld [vmem:[%s193 + $0x70] sm:$0xff]
      %v216 = vld [vmem:[%s193 + $0x78] sm:$0xff]
      %v217 = vld [vmem:[%s193 + $0x80] sm:$0xff]
      %v218 = vld [vmem:[%s193 + $0x88] sm:$0xff]
      %v219 = vld [vmem:[%s193 + $0x90] sm:$0xff]
      %v220 = vld [vmem:[%s193 + $0x98] sm:$0xff]
      %v221 = vld [vmem:[%s193 + $0xa0] sm:$0xff]
      %v222 = vld [vmem:[%s193 + $0xa8] sm:$0xff]
      %v223 = vld [vmem:[%s193 + $0xb0] sm:$0xff]
      %v224 = vld [vmem:[%s193 + $0xb8] sm:$0xff]
      %v225 = vld [vmem:[%s193 + $0xc0] sm:$0xff]
      %v226 = vld [vmem:[%s193 + $0xc8] sm:$0xff]
      %v227 = vld [vmem:[%s193 + $0xd0] sm:$0xff]
      %v228 = vld [vmem:[%s193 + $0xd8] sm:$0xff]
      %v229 = vld [vmem:[%s193 + $0xe0] sm:$0xff]
      %v230 = vld [vmem:[%s193 + $0xe8] sm:$0xff]
      %v231 = vld [vmem:[%s193 + $0xf0] sm:$0xff]
      %v232 = vld [vmem:[%s193 + $0xf8] sm:$0xff]
      %v233 = vld [vmem:[%s1] sm:$0x1]
      %v234 = vmul.f32 %v233, 0.0016666667
      %v235 = vld [vmem:[%s1 + $0x1] sm:$0x1]
      %v236 = vmul.f32 %v235, 0.0016666667
      %v237 = vmul.f32 %v234, %v234
      %v238 = vsub.f32 %v236, %v237
      %v239 = vadd.f32 %v238, 1e-05
      %v240 = vrsqrt.pop %v239
      %v241 = vmul.f32 %v240, %v239
      %v242 = vmul.f32 %v241, %v240
      %v243 = vmul.f32 0.5, %v242
      %v244 = vsub.f32 1.5, %v243
      %v245 = vmul.f32 %v240, %v244
      %vm246 = vweird.f32 %v239
      %vm247 = vweird.f32 %v240
      %vm248 = vmor %vm246, %vm247
      %v249 = vsel %vm248, %v240, %v245
      %v250 = vperm.slane %v234, 0
      %v251 = vsub.f32 %v201, %v250
      %v252 = vsub.f32 %v202, %v250
      %v253 = vsub.f32 %v203, %v250
      %v254 = vsub.f32 %v204, %v250
      %v255 = vsub.f32 %v205, %v250
      %v256 = vsub.f32 %v206, %v250
      %v257 = vsub.f32 %v207, %v250
      %v258 = vsub.f32 %v208, %v250
      %v259 = vsub.f32 %v209, %v250
      %v260 = vsub.f32 %v210, %v250
      %v261 = vsub.f32 %v211, %v250
      %v262 = vsub.f32 %v212, %v250
      %v263 = vsub.f32 %v213, %v250
      %v264 = vsub.f32 %v214, %v250
      %v265 = vsub.f32 %v215, %v250
      %v266 = vsub.f32 %v216, %v250
      %v267 = vsub.f32 %v217, %v250
      %v268 = vsub.f32 %v218, %v250
      %v269 = vsub.f32 %v219, %v250
      %v270 = vsub.f32 %v220, %v250
      %v271 = vsub.f32 %v221, %v250
      %v272 = vsub.f32 %v222, %v250
      %v273 = vsub.f32 %v223, %v250
      %v274 = vsub.f32 %v224, %v250
      %v275 = vsub.f32 %v225, %v250
      %v276 = vsub.f32 %v226, %v250
      %v277 = vsub.f32 %v227, %v250
      %v278 = vsub.f32 %v228, %v250
      %v279 = vsub.f32 %v229, %v250
      %v280 = vsub.f32 %v230, %v250
      %v281 = vsub.f32 %v231, %v250
      %v282 = vsub.f32 %v232, %v250
      %v283 = vld [vmem:[%s2] sm:$0x1]
      %v284 = vmul.f32 %v249, %v283
      %v285 = vperm.slane %v284, 0
      %v286 = vmul.f32 %v251, %v285
      %v287 = vmul.f32 %v252, %v285
      %v288 = vmul.f32 %v253, %v285
      %v289 = vmul.f32 %v254, %v285
      %v290 = vmul.f32 %v255, %v285
      %v291 = vmul.f32 %v256, %v285
      %v292 = vmul.f32 %v257, %v285
      %v293 = vmul.f32 %v258, %v285
      %v294 = vmul.f32 %v259, %v285
      %v295 = vmul.f32 %v260, %v285
      %v296 = vmul.f32 %v261, %v285
      %v297 = vmul.f32 %v262, %v285
      %v298 = vmul.f32 %v263, %v285
      %v299 = vmul.f32 %v264, %v285
      %v300 = vmul.f32 %v265, %v285
      %v301 = vmul.f32 %v266, %v285
      %v302 = vmul.f32 %v267, %v285
      %v303 = vmul.f32 %v268, %v285
      %v304 = vmul.f32 %v269, %v285
      %v305 = vmul.f32 %v270, %v285
      %v306 = vmul.f32 %v271, %v285
      %v307 = vmul.f32 %v272, %v285
      %v308 = vmul.f32 %v273, %v285
      %v309 = vmul.f32 %v274, %v285
      %v310 = vmul.f32 %v275, %v285
      %v311 = vmul.f32 %v276, %v285
      %v312 = vmul.f32 %v277, %v285
      %v313 = vmul.f32 %v278, %v285
      %v314 = vmul.f32 %v279, %v285
      %v315 = vmul.f32 %v280, %v285
      %v316 = vmul.f32 %v281, %v285
      %v317 = vmul.f32 %v282, %v285
      %v318 = vld [vmem:[%s3] sm:$0x1]
      %v320 = vperm.slane %v318, 0
      %v322 = vadd.f32 %v286, %v320
      %v323 = vadd.f32 %v287, %v320
      %v324 = vadd.f32 %v288, %v320
      %v325 = vadd.f32 %v289, %v320
      %v326 = vadd.f32 %v290, %v320
      %v327 = vadd.f32 %v291, %v320
      %v328 = vadd.f32 %v292, %v320
      %v329 = vadd.f32 %v293, %v320
      %v330 = vadd.f32 %v294, %v320
      %v331 = vadd.f32 %v295, %v320
      %v332 = vadd.f32 %v296, %v320
      %v333 = vadd.f32 %v297, %v320
      %v334 = vadd.f32 %v298, %v320
      %v335 = vadd.f32 %v299, %v320
      %v336 = vadd.f32 %v300, %v320
      %v337 = vadd.f32 %v301, %v320
      %v338 = vadd.f32 %v302, %v320
      %v339 = vadd.f32 %v303, %v320
      %v340 = vadd.f32 %v304, %v320
      %v341 = vadd.f32 %v305, %v320
      %v342 = vadd.f32 %v306, %v320
      %v343 = vadd.f32 %v307, %v320
      %v344 = vadd.f32 %v308, %v320
      %v345 = vadd.f32 %v309, %v320
      %v346 = vadd.f32 %v310, %v320
      %v347 = vadd.f32 %v311, %v320
      %v348 = vadd.f32 %v312, %v320
      %v349 = vadd.f32 %v313, %v320
      %v350 = vadd.f32 %v314, %v320
      %v351 = vadd.f32 %v315, %v320
      %v352 = vadd.f32 %v316, %v320
      %v353 = vadd.f32 %v317, %v320
      %v354 = vmax.f32 %v322, 0.0
      %v355 = vmax.f32 %v323, 0.0
      %v356 = vmax.f32 %v324, 0.0
      %v357 = vmax.f32 %v325, 0.0
      %v358 = vmax.f32 %v326, 0.0
      %v359 = vmax.f32 %v327, 0.0
      %v360 = vmax.f32 %v328, 0.0
      %v361 = vmax.f32 %v329, 0.0
      %v362 = vmax.f32 %v330, 0.0
      %v363 = vmax.f32 %v331, 0.0
      %v364 = vmax.f32 %v332, 0.0
      %v365 = vmax.f32 %v333, 0.0
      %v366 = vmax.f32 %v334, 0.0
      %v367 = vmax.f32 %v335, 0.0
      %v368 = vmax.f32 %v336, 0.0
      %v369 = vmax.f32 %v337, 0.0
      %v370 = vmax.f32 %v338, 0.0
      %v371 = vmax.f32 %v339, 0.0
      %v372 = vmax.f32 %v340, 0.0
      %v373 = vmax.f32 %v341, 0.0
      %v374 = vmax.f32 %v342, 0.0
      %v375 = vmax.f32 %v343, 0.0
      %v376 = vmax.f32 %v344, 0.0
      %v377 = vmax.f32 %v345, 0.0
      %v378 = vmax.f32 %v346, 0.0
      %v379 = vmax.f32 %v347, 0.0
      %v380 = vmax.f32 %v348, 0.0
      %v381 = vmax.f32 %v349, 0.0
      %v382 = vmax.f32 %v350, 0.0
      %v383 = vmax.f32 %v351, 0.0
      %v384 = vmax.f32 %v352, 0.0
      %v385 = vmax.f32 %v353, 0.0
      %v386 = vpack.c.bf16 %v354, %v354
      %v387 = vpack.c.bf16 %v355, %v355
      %v388 = vpack.c.bf16 %v356, %v356
      %v389 = vpack.c.bf16 %v357, %v357
      %v390 = vpack.c.bf16 %v358, %v358
      %v391 = vpack.c.bf16 %v359, %v359
      %v392 = vpack.c.bf16 %v360, %v360
      %v393 = vpack.c.bf16 %v361, %v361
      %v394 = vpack.c.bf16 %v362, %v362
      %v395 = vpack.c.bf16 %v363, %v363
      %v396 = vpack.c.bf16 %v364, %v364
      %v397 = vpack.c.bf16 %v365, %v365
      %v398 = vpack.c.bf16 %v366, %v366
      %v399 = vpack.c.bf16 %v367, %v367
      %v400 = vpack.c.bf16 %v368, %v368
      %v401 = vpack.c.bf16 %v369, %v369
      %v402 = vpack.c.bf16 %v370, %v370
      %v403 = vpack.c.bf16 %v371, %v371
      %v404 = vpack.c.bf16 %v372, %v372
      %v405 = vpack.c.bf16 %v373, %v373
      %v406 = vpack.c.bf16 %v374, %v374
      %v407 = vpack.c.bf16 %v375, %v375
      %v408 = vpack.c.bf16 %v376, %v376
      %v409 = vpack.c.bf16 %v377, %v377
      %v410 = vpack.c.bf16 %v378, %v378
      %v411 = vpack.c.bf16 %v379, %v379
      %v412 = vpack.c.bf16 %v380, %v380
      %v413 = vpack.c.bf16 %v381, %v381
      %v414 = vpack.c.bf16 %v382, %v382
      %v415 = vpack.c.bf16 %v383, %v383
      %v416 = vpack.c.bf16 %v384, %v384
      %v417 = vpack.c.bf16 %v385, %v385
      %418 = vst [vmem:[%s199] sm:$0xf] %v386
      %419 = vst [vmem:[%s199 + $0x4] sm:$0xf] %v387
      %420 = vst [vmem:[%s199 + $0x8] sm:$0xf] %v388
      %421 = vst [vmem:[%s199 + $0xc] sm:$0xf] %v389
      %422 = vst [vmem:[%s199 + $0x10] sm:$0xf] %v390
      %423 = vst [vmem:[%s199 + $0x14] sm:$0xf] %v391
      %424 = vst [vmem:[%s199 + $0x18] sm:$0xf] %v392
      %425 = vst [vmem:[%s199 + $0x1c] sm:$0xf] %v393
      %426 = vst [vmem:[%s199 + $0x20] sm:$0xf] %v394
      %427 = vst [vmem:[%s199 + $0x24] sm:$0xf] %v395
      %428 = vst [vmem:[%s199 + $0x28] sm:$0xf] %v396
      %429 = vst [vmem:[%s199 + $0x2c] sm:$0xf] %v397
      %430 = vst [vmem:[%s199 + $0x30] sm:$0xf] %v398
      %431 = vst [vmem:[%s199 + $0x34] sm:$0xf] %v399
      %432 = vst [vmem:[%s199 + $0x38] sm:$0xf] %v400
      %433 = vst [vmem:[%s199 + $0x3c] sm:$0xf] %v401
      %434 = vst [vmem:[%s199 + $0x40] sm:$0xf] %v402
      %435 = vst [vmem:[%s199 + $0x44] sm:$0xf] %v403
      %436 = vst [vmem:[%s199 + $0x48] sm:$0xf] %v404
      %437 = vst [vmem:[%s199 + $0x4c] sm:$0xf] %v405
      %438 = vst [vmem:[%s199 + $0x50] sm:$0xf] %v406
      %439 = vst [vmem:[%s199 + $0x54] sm:$0xf] %v407
      %440 = vst [vmem:[%s199 + $0x58] sm:$0xf] %v408
      %441 = vst [vmem:[%s199 + $0x5c] sm:$0xf] %v409
      %442 = vst [vmem:[%s199 + $0x60] sm:$0xf] %v410
      %443 = vst [vmem:[%s199 + $0x64] sm:$0xf] %v411
      %444 = vst [vmem:[%s199 + $0x68] sm:$0xf] %v412
      %445 = vst [vmem:[%s199 + $0x6c] sm:$0xf] %v413
      %446 = vst [vmem:[%s199 + $0x70] sm:$0xf] %v414
      %447 = vst [vmem:[%s199 + $0x74] sm:$0xf] %v415
      %448 = vst [vmem:[%s199 + $0x78] sm:$0xf] %v416
      %449 = vst [vmem:[%s199 + $0x7c] sm:$0xf] %v417
      %s450 = smul.u32 32, %s15
      %p451 = scmp.lt.s32.totalorder %s450, 95
      %s452 = scalar_select %p451, %s450, 95
      %s453 = smul.addr %s452, 4
      %s454 = scalar_lea.vmem %s4, %s453
      // Predicated region
      $region37: #{protein_module_forward.5} parent=35 // pred_check
        %p455 = pneg %p122
      $region38: #{protein_module_forward.5} parent=35 // pred_check_branch
        %457 = sbr.rel (%p455) target = $region40
      $region39: #{protein_module_forward.5} parent=35 // pred_region
        %s458 = smul.u32 32, %s15
      $region40: #{protein_module_forward.5} parent=35 // pred_fallthru
        _
    $region36: #{protein_module_forward.5} parent=5 // pred_fallthru
      _
    %p459 = scmp.le.s32.totalorder 2, %s10
    // Predicated region
    $region41: #{protein_module_forward.5} parent=5 // pred_check
      %p460 = pneg %p459
    $region42: #{protein_module_forward.5} parent=5 // pred_check_branch
      %462 = sbr.rel (%p460) target = $region44
    $region43: #{protein_module_forward.5} parent=5 // pred_region
      %s463 = ssub.s32 %s10, 2
      // Predicated region
      $region45: #{protein_module_forward.5} parent=43 // pred_check
        %p464 = pneg %p128
      $region46: #{protein_module_forward.5} parent=43 // pred_check_branch
        %466 = sbr.rel (%p464) target = $region48
      $region47: #{protein_module_forward.5} parent=43 // pred_region
        %s467 = smul.u32 32, %s16
        %p468 = scmp.lt.s32.totalorder %s467, 95
        %s469 = scalar_select %p468, %s467, 95
        %s470 = smul.addr %s469, 4
        %s471 = scalar_lea.vmem %s4, %s470
      $region48: #{protein_module_forward.5} parent=43 // pred_fallthru
        _
    $region44: #{protein_module_forward.5} parent=5 // pred_fallthru
      _
  $region6: #{protein_module_forward.5} parent=0 // loop_footer
    %s14 = sadd.s32 1, %s10
  $region7: #{protein_module_forward.5} parent=0 // loop_footer_branch
    %9 = sbr.rel target = $region3
  $region8: #{protein_module_forward.5} parent=0 // loop_exit
    _

// kernel: protein_module_forward.7
$region0: #{protein_module_forward.7}
  #allocation0 [shape = 'u32[]', space=smem, size = 0x4, offset = 0x4, fixed_abs, tag = 'smem constant byte address 0x4 - core index']
  #allocation1 [shape = 'u32[72,128]{1,0:T(1,128)}', space=vmem, size = 0x9000, scoped, tag = 'internal scratch']
  %s0 = inlined_call_operand.vmem [shape: f32[768,128], index: 0, kind: input, shape index: {}]
  %s1 = inlined_call_operand.vmem [shape: f32[2,128], index: 1, kind: input, shape index: {}]
  %s2 = inlined_call_operand.vmem [shape: f32[1,128], index: 2, kind: input, shape index: {}]
  %s3 = inlined_call_operand.vmem [shape: f32[1,128], index: 3, kind: input, shape index: {}]
  %s4 = inlined_call_operand.vmem [shape: f32[768,128], index: 4, kind: output, shape index: {}]
  %s5 = sld [smem:[#allocation0]]
  $region49: #{protein_module_forward.7} parent=0
    _
  %s7 = ssub.s32 1, %s5
  %s8 = scalar_select 0, %s7, %s5
  loop: start=0, step=1, limit=5
  $region2: #{protein_module_forward.7} parent=0 // loop_pre_header
    _
  $region3: #{protein_module_forward.7} parent=0 // loop_header
    %s10 = sphi 0, %s14
    %p11 = scmp.ge.s32.totalorder %s10, 5
    %s20 = sphi 0, %s22
    %s23 = sphi 0, %s20
    %s24 = sphi 0, %s23
    %s40 = sphi 0, %s24
    %s44 = sphi 0, %s44
    %s46 = sphi 0, %s44
    %s47 = sphi 0, %s46
    %s61 = sphi 0, %s47
    %s65 = sphi 0, %s65
    %s67 = sphi 0, %s65
    %s68 = sphi 0, %s67
    %s82 = sphi 0, %s68
    %s86 = sphi 0, %s86
    %s88 = sphi 0, %s86
    %s89 = sphi 0, %s88
    %s103 = sphi 0, %s89
    %s109 = sphi 0, %s111
    %s112 = sphi 0, %s109
    %s113 = sphi 0, %s112
    %s129 = sphi 0, %s113
  $region4: #{protein_module_forward.7} parent=0 // loop_header_branch
    %13 = sbr.rel (%p11) target = $region8
  $region5: #{protein_module_forward.7} parent=0 // loop_body
    %s15 = ssub.s32 %s10, 1
    %s16 = ssub.s32 %s10, 2
    %s17 = sadd.s32 %s10, 1
    %s18 = ssub.s32 %s10, %s17
    %p19 = scmp.eq.s32.totalorder %s18, 0
    %s21 = sadd.s32 %s20, 1
    %s22 = scalar_select %p19, %s20, %s21
    %p25 = pneg %p19
    %p26 = scmp.eq.s32.totalorder %s10, 2
    %p27 = por %p25, %p26
    %p28 = scmp.ne.s32.totalorder %s20, %s23
    %p29 = scmp.eq.s32.totalorder %s10, 0
    %p30 = por %p28, %p29
    %p31 = scmp.ne.s32.totalorder %s20, %s23
    %p32 = scmp.eq.s32.totalorder %s15, 2
    %p33 = por %p31, %p32
    %p34 = scmp.ne.s32.totalorder %s23, %s24
    %p35 = scmp.eq.s32.totalorder %s15, 0
    %p36 = por %p34, %p35
    %p37 = scmp.ne.s32.totalorder %s23, %s24
    %p38 = scmp.eq.s32.totalorder %s16, 2
    %p39 = por %p37, %p38
    %p41 = scmp.ne.s32.totalorder %s24, %s40
    %p42 = scmp.eq.s32.totalorder %s16, 0
    %p43 = por %p41, %p42
    %s45 = sadd.s32 %s44, 1
    %p48 = scmp.eq.s32.totalorder %s10, 2
    %p49 = scmp.ne.s32.totalorder %s44, %s46
    %p50 = scmp.eq.s32.totalorder %s10, 0
    %p51 = por %p49, %p50
    %p52 = scmp.ne.s32.totalorder %s44, %s46
    %p53 = scmp.eq.s32.totalorder %s15, 2
    %p54 = por %p52, %p53
    %p55 = scmp.ne.s32.totalorder %s46, %s47
    %p56 = scmp.eq.s32.totalorder %s15, 0
    %p57 = por %p55, %p56
    %p58 = scmp.ne.s32.totalorder %s46, %s47
    %p59 = scmp.eq.s32.totalorder %s16, 2
    %p60 = por %p58, %p59
    %p62 = scmp.ne.s32.totalorder %s47, %s61
    %p63 = scmp.eq.s32.totalorder %s16, 0
    %p64 = por %p62, %p63
    %s66 = sadd.s32 %s65, 1
    %p69 = scmp.eq.s32.totalorder %s10, 2
    %p70 = scmp.ne.s32.totalorder %s65, %s67
    %p71 = scmp.eq.s32.totalorder %s10, 0
    %p72 = por %p70, %p71
    %p73 = scmp.ne.s32.totalorder %s65, %s67
    %p74 = scmp.eq.s32.totalorder %s15, 2
    %p75 = por %p73, %p74
    %p76 = scmp.ne.s32.totalorder %s67, %s68
    %p77 = scmp.eq.s32.totalorder %s15, 0
    %p78 = por %p76, %p77
    %p79 = scmp.ne.s32.totalorder %s67, %s68
    %p80 = scmp.eq.s32.totalorder %s16, 2
    %p81 = por %p79, %p80
    %p83 = scmp.ne.s32.totalorder %s68, %s82
    %p84 = scmp.eq.s32.totalorder %s16, 0
    %p85 = por %p83, %p84
    %s87 = sadd.s32 %s86, 1
    %p90 = scmp.eq.s32.totalorder %s10, 2
    %p91 = scmp.ne.s32.totalorder %s86, %s88
    %p92 = scmp.eq.s32.totalorder %s10, 0
    %p93 = por %p91, %p92
    %p94 = scmp.ne.s32.totalorder %s86, %s88
    %p95 = scmp.eq.s32.totalorder %s15, 2
    %p96 = por %p94, %p95
    %p97 = scmp.ne.s32.totalorder %s88, %s89
    %p98 = scmp.eq.s32.totalorder %s15, 0
    %p99 = por %p97, %p98
    %p100 = scmp.ne.s32.totalorder %s88, %s89
    %p101 = scmp.eq.s32.totalorder %s16, 2
    %p102 = por %p100, %p101
    %p104 = scmp.ne.s32.totalorder %s89, %s103
    %p105 = scmp.eq.s32.totalorder %s16, 0
    %p106 = por %p104, %p105
    %s107 = ssub.s32 %s10, %s17
    %p108 = scmp.eq.s32.totalorder %s107, 0
    %s110 = sadd.s32 %s109, 1
    %s111 = scalar_select %p108, %s109, %s110
    %p114 = pneg %p108
    %p115 = scmp.eq.s32.totalorder %s10, 2
    %p116 = por %p114, %p115
    %p117 = scmp.ne.s32.totalorder %s109, %s112
    %p118 = scmp.eq.s32.totalorder %s10, 0
    %p119 = por %p117, %p118
    %p120 = scmp.ne.s32.totalorder %s109, %s112
    %p121 = scmp.eq.s32.totalorder %s15, 2
    %p122 = por %p120, %p121
    %p123 = scmp.ne.s32.totalorder %s112, %s113
    %p124 = scmp.eq.s32.totalorder %s15, 0
    %p125 = por %p123, %p124
    %p126 = scmp.ne.s32.totalorder %s112, %s113
    %p127 = scmp.eq.s32.totalorder %s16, 2
    %p128 = por %p126, %p127
    %p130 = scmp.ne.s32.totalorder %s113, %s129
    %p131 = scmp.eq.s32.totalorder %s16, 0
    %p132 = por %p130, %p131
    %p133 = scmp.le.s32.totalorder 1, %s10
    %p134 = scmp.lt.s32.totalorder %s10, 4
    %p135 = pnand %p133, %p134
    %p136 = pneg %p135
    // Predicated region
    $region9: #{protein_module_forward.7} parent=5 // pred_check
      _
    $region10: #{protein_module_forward.7} parent=5 // pred_check_branch
      %138 = sbr.rel (%p135) target = $region12
    $region11: #{protein_module_forward.7} parent=5 // pred_region
      %s139 = ssub.s32 %s10, 1
      // Predicated region
      $region13: #{protein_module_forward.7} parent=11 // pred_check
        %p140 = pneg %p57
      $region14: #{protein_module_forward.7} parent=11 // pred_check_branch
        %142 = sbr.rel (%p140) target = $region16
      $region15: #{protein_module_forward.7} parent=11 // pred_region
        _
      $region16: #{protein_module_forward.7} parent=11 // pred_fallthru
        _
      // Predicated region
      $region17: #{protein_module_forward.7} parent=11 // pred_check
        %p143 = pneg %p78
      $region18: #{protein_module_forward.7} parent=11 // pred_check_branch
        %145 = sbr.rel (%p143) target = $region20
      $region19: #{protein_module_forward.7} parent=11 // pred_region
        _
      $region20: #{protein_module_forward.7} parent=11 // pred_fallthru
        _
      // Predicated region
      $region21: #{protein_module_forward.7} parent=11 // pred_check
        %p146 = pneg %p99
      $region22: #{protein_module_forward.7} parent=11 // pred_check_branch
        %148 = sbr.rel (%p146) target = $region24
      $region23: #{protein_module_forward.7} parent=11 // pred_region
        _
      $region24: #{protein_module_forward.7} parent=11 // pred_fallthru
        _
    $region12: #{protein_module_forward.7} parent=5 // pred_fallthru
      _
    %p149 = scmp.lt.s32.totalorder %s10, 3
    // Predicated region
    $region25: #{protein_module_forward.7} parent=5 // pred_check
      %p150 = pneg %p149
    $region26: #{protein_module_forward.7} parent=5 // pred_check_branch
      %152 = sbr.rel (%p150) target = $region28
    $region27: #{protein_module_forward.7} parent=5 // pred_region
      // Predicated region
      $region29: #{protein_module_forward.7} parent=27 // pred_check
        %p153 = pneg %p30
      $region30: #{protein_module_forward.7} parent=27 // pred_check_branch
        %155 = sbr.rel (%p153) target = $region32
      $region31: #{protein_module_forward.7} parent=27 // pred_region
        %s156 = smul.u32 32, %s10
        %p157 = scmp.lt.s32.totalorder %s156, 95
        %s158 = scalar_select %p157, %s156, 95
        %s159 = smul.addr %s158, 8
        %s160 = scalar_lea.vmem %s0, %s159
        %s161 = smul.u32 32, %s10
      $region32: #{protein_module_forward.7} parent=27 // pred_fallthru
        _
    $region28: #{protein_module_forward.7} parent=5 // pred_fallthru
      _
    %p162 = scmp.le.s32.totalorder 1, %s10
    %p163 = scmp.lt.s32.totalorder %s10, 4
    %p164 = pnand %p162, %p163
    %p165 = pneg %p164
    // Predicated region
    $region33: #{protein_module_forward.7} parent=5 // pred_check
      _
    $region34: #{protein_module_forward.7} parent=5 // pred_check_branch
      %167 = sbr.rel (%p164) target = $region36
    $region35: #{protein_module_forward.7} parent=5 // pred_region
      %s168 = ssub.s32 %s10, 1
      %s169 = smul.u32 32, %s15
      %p170 = scmp.lt.s32.totalorder %s169, 95
      %s171 = scalar_select %p170, %s169, 95
      %s172 = smul.addr %s171, 8
      %s173 = scalar_lea.vmem %s0, %s172
      %p174 = pneg %p36
      %p175 = pneg %p33
      %p176 = pneg %p57
      %p177 = pneg %p54
      %p178 = pneg %p78
      %p179 = pneg %p75
      %p180 = pneg %p99
      %p181 = pneg %p96
      %p182 = pneg %p125
      %p183 = pneg %p122
      %s184 = smul.u32 32, %s15
      %p185 = scmp.lt.s32.totalorder %s184, 95
      %s186 = scalar_select %p185, %s184, 95
      %s187 = smul.addr %s186, 8
      %s188 = scalar_lea.vmem %s4, %s187
      %s189 = smul.u32 32, %s15
      %p190 = scmp.lt.s32.totalorder %s189, 95
      %s191 = scalar_select %p190, %s189, 95
      %s192 = smul.addr %s191, 8
      %s193 = scalar_lea.vmem %s0, %s192
      %s194 = smul.u32 32, %s15
      %s195 = smul.u32 32, %s15
      %p196 = scmp.lt.s32.totalorder %s195, 95
      %s197 = scalar_select %p196, %s195, 95
      %s198 = smul.addr %s197, 8
      %s199 = scalar_lea.vmem %s4, %s198
      %s200 = smul.u32 32, %s15
      %v201 = vld [vmem:[%s193] sm:$0xff]
      %v202 = vld [vmem:[%s193 + $0x8] sm:$0xff]
      %v203 = vld [vmem:[%s193 + $0x10] sm:$0xff]
      %v204 = vld [vmem:[%s193 + $0x18] sm:$0xff]
      %v205 = vld [vmem:[%s193 + $0x20] sm:$0xff]
      %v206 = vld [vmem:[%s193 + $0x28] sm:$0xff]
      %v207 = vld [vmem:[%s193 + $0x30] sm:$0xff]
      %v208 = vld [vmem:[%s193 + $0x38] sm:$0xff]
      %v209 = vld [vmem:[%s193 + $0x40] sm:$0xff]
      %v210 = vld [vmem:[%s193 + $0x48] sm:$0xff]
      %v211 = vld [vmem:[%s193 + $0x50] sm:$0xff]
      %v212 = vld [vmem:[%s193 + $0x58] sm:$0xff]
      %v213 = vld [vmem:[%s193 + $0x60] sm:$0xff]
      %v214 = vld [vmem:[%s193 + $0x68] sm:$0xff]
      %v215 = vld [vmem:[%s193 + $0x70] sm:$0xff]
      %v216 = vld [vmem:[%s193 + $0x78] sm:$0xff]
      %v217 = vld [vmem:[%s193 + $0x80] sm:$0xff]
      %v218 = vld [vmem:[%s193 + $0x88] sm:$0xff]
      %v219 = vld [vmem:[%s193 + $0x90] sm:$0xff]
      %v220 = vld [vmem:[%s193 + $0x98] sm:$0xff]
      %v221 = vld [vmem:[%s193 + $0xa0] sm:$0xff]
      %v222 = vld [vmem:[%s193 + $0xa8] sm:$0xff]
      %v223 = vld [vmem:[%s193 + $0xb0] sm:$0xff]
      %v224 = vld [vmem:[%s193 + $0xb8] sm:$0xff]
      %v225 = vld [vmem:[%s193 + $0xc0] sm:$0xff]
      %v226 = vld [vmem:[%s193 + $0xc8] sm:$0xff]
      %v227 = vld [vmem:[%s193 + $0xd0] sm:$0xff]
      %v228 = vld [vmem:[%s193 + $0xd8] sm:$0xff]
      %v229 = vld [vmem:[%s193 + $0xe0] sm:$0xff]
      %v230 = vld [vmem:[%s193 + $0xe8] sm:$0xff]
      %v231 = vld [vmem:[%s193 + $0xf0] sm:$0xff]
      %v232 = vld [vmem:[%s193 + $0xf8] sm:$0xff]
      %v233 = vld [vmem:[%s1] sm:$0x1]
      %v234 = vmul.f32 %v233, 0.0016666667
      %v235 = vld [vmem:[%s1 + $0x1] sm:$0x1]
      %v236 = vmul.f32 %v235, 0.0016666667
      %v237 = vmul.f32 %v234, %v234
      %v238 = vsub.f32 %v236, %v237
      %v239 = vadd.f32 %v238, 1e-05
      %v240 = vrsqrt.pop %v239
      %v241 = vmul.f32 %v240, %v239
      %v242 = vmul.f32 %v241, %v240
      %v243 = vmul.f32 0.5, %v242
      %v244 = vsub.f32 1.5, %v243
      %v245 = vmul.f32 %v240, %v244
      %vm246 = vweird.f32 %v239
      %vm247 = vweird.f32 %v240
      %vm248 = vmor %vm246, %vm247
      %v249 = vsel %vm248, %v240, %v245
      %v250 = vperm.slane %v234, 0
      %v251 = vsub.f32 %v201, %v250
      %v252 = vsub.f32 %v202, %v250
      %v253 = vsub.f32 %v203, %v250
      %v254 = vsub.f32 %v204, %v250
      %v255 = vsub.f32 %v205, %v250
      %v256 = vsub.f32 %v206, %v250
      %v257 = vsub.f32 %v207, %v250
      %v258 = vsub.f32 %v208, %v250
      %v259 = vsub.f32 %v209, %v250
      %v260 = vsub.f32 %v210, %v250
      %v261 = vsub.f32 %v211, %v250
      %v262 = vsub.f32 %v212, %v250
      %v263 = vsub.f32 %v213, %v250
      %v264 = vsub.f32 %v214, %v250
      %v265 = vsub.f32 %v215, %v250
      %v266 = vsub.f32 %v216, %v250
      %v267 = vsub.f32 %v217, %v250
      %v268 = vsub.f32 %v218, %v250
      %v269 = vsub.f32 %v219, %v250
      %v270 = vsub.f32 %v220, %v250
      %v271 = vsub.f32 %v221, %v250
      %v272 = vsub.f32 %v222, %v250
      %v273 = vsub.f32 %v223, %v250
      %v274 = vsub.f32 %v224, %v250
      %v275 = vsub.f32 %v225, %v250
      %v276 = vsub.f32 %v226, %v250
      %v277 = vsub.f32 %v227, %v250
      %v278 = vsub.f32 %v228, %v250
      %v279 = vsub.f32 %v229, %v250
      %v280 = vsub.f32 %v230, %v250
      %v281 = vsub.f32 %v231, %v250
      %v282 = vsub.f32 %v232, %v250
      %v283 = vld [vmem:[%s2] sm:$0x1]
      %v284 = vmul.f32 %v249, %v283
      %v285 = vperm.slane %v284, 0
      %v286 = vmul.f32 %v251, %v285
      %v287 = vmul.f32 %v252, %v285
      %v288 = vmul.f32 %v253, %v285
      %v289 = vmul.f32 %v254, %v285
      %v290 = vmul.f32 %v255, %v285
      %v291 = vmul.f32 %v256, %v285
      %v292 = vmul.f32 %v257, %v285
      %v293 = vmul.f32 %v258, %v285
      %v294 = vmul.f32 %v259, %v285
      %v295 = vmul.f32 %v260, %v285
      %v296 = vmul.f32 %v261, %v285
      %v297 = vmul.f32 %v262, %v285
      %v298 = vmul.f32 %v263, %v285
      %v299 = vmul.f32 %v264, %v285
      %v300 = vmul.f32 %v265, %v285
      %v301 = vmul.f32 %v266, %v285
      %v302 = vmul.f32 %v267, %v285
      %v303 = vmul.f32 %v268, %v285
      %v304 = vmul.f32 %v269, %v285
      %v305 = vmul.f32 %v270, %v285
      %v306 = vmul.f32 %v271, %v285
      %v307 = vmul.f32 %v272, %v285
      %v308 = vmul.f32 %v273, %v285
      %v309 = vmul.f32 %v274, %v285
      %v310 = vmul.f32 %v275, %v285
      %v311 = vmul.f32 %v276, %v285
      %v312 = vmul.f32 %v277, %v285
      %v313 = vmul.f32 %v278, %v285
      %v314 = vmul.f32 %v279, %v285
      %v315 = vmul.f32 %v280, %v285
      %v316 = vmul.f32 %v281, %v285
      %v317 = vmul.f32 %v282, %v285
      %v318 = vld [vmem:[%s3] sm:$0x1]
      %v320 = vperm.slane %v318, 0
      %v322 = vadd.f32 %v286, %v320
      %v323 = vadd.f32 %v287, %v320
      %v324 = vadd.f32 %v288, %v320
      %v325 = vadd.f32 %v289, %v320
      %v326 = vadd.f32 %v290, %v320
      %v327 = vadd.f32 %v291, %v320
      %v328 = vadd.f32 %v292, %v320
      %v329 = vadd.f32 %v293, %v320
      %v330 = vadd.f32 %v294, %v320
      %v331 = vadd.f32 %v295, %v320
      %v332 = vadd.f32 %v296, %v320
      %v333 = vadd.f32 %v297, %v320
      %v334 = vadd.f32 %v298, %v320
      %v335 = vadd.f32 %v299, %v320
      %v336 = vadd.f32 %v300, %v320
      %v337 = vadd.f32 %v301, %v320
      %v338 = vadd.f32 %v302, %v320
      %v339 = vadd.f32 %v303, %v320
      %v340 = vadd.f32 %v304, %v320
      %v341 = vadd.f32 %v305, %v320
      %v342 = vadd.f32 %v306, %v320
      %v343 = vadd.f32 %v307, %v320
      %v344 = vadd.f32 %v308, %v320
      %v345 = vadd.f32 %v309, %v320
      %v346 = vadd.f32 %v310, %v320
      %v347 = vadd.f32 %v311, %v320
      %v348 = vadd.f32 %v312, %v320
      %v349 = vadd.f32 %v313, %v320
      %v350 = vadd.f32 %v314, %v320
      %v351 = vadd.f32 %v315, %v320
      %v352 = vadd.f32 %v316, %v320
      %v353 = vadd.f32 %v317, %v320
      %v354 = vmax.f32 %v322, 0.0
      %v355 = vmax.f32 %v323, 0.0
      %v356 = vmax.f32 %v324, 0.0
      %v357 = vmax.f32 %v325, 0.0
      %v358 = vmax.f32 %v326, 0.0
      %v359 = vmax.f32 %v327, 0.0
      %v360 = vmax.f32 %v328, 0.0
      %v361 = vmax.f32 %v329, 0.0
      %v362 = vmax.f32 %v330, 0.0
      %v363 = vmax.f32 %v331, 0.0
      %v364 = vmax.f32 %v332, 0.0
      %v365 = vmax.f32 %v333, 0.0
      %v366 = vmax.f32 %v334, 0.0
      %v367 = vmax.f32 %v335, 0.0
      %v368 = vmax.f32 %v336, 0.0
      %v369 = vmax.f32 %v337, 0.0
      %v370 = vmax.f32 %v338, 0.0
      %v371 = vmax.f32 %v339, 0.0
      %v372 = vmax.f32 %v340, 0.0
      %v373 = vmax.f32 %v341, 0.0
      %v374 = vmax.f32 %v342, 0.0
      %v375 = vmax.f32 %v343, 0.0
      %v376 = vmax.f32 %v344, 0.0
      %v377 = vmax.f32 %v345, 0.0
      %v378 = vmax.f32 %v346, 0.0
      %v379 = vmax.f32 %v347, 0.0
      %v380 = vmax.f32 %v348, 0.0
      %v381 = vmax.f32 %v349, 0.0
      %v382 = vmax.f32 %v350, 0.0
      %v383 = vmax.f32 %v351, 0.0
      %v384 = vmax.f32 %v352, 0.0
      %v385 = vmax.f32 %v353, 0.0
      %386 = vst [vmem:[%s199] sm:$0xff] %v354
      %387 = vst [vmem:[%s199 + $0x8] sm:$0xff] %v355
      %388 = vst [vmem:[%s199 + $0x10] sm:$0xff] %v356
      %389 = vst [vmem:[%s199 + $0x18] sm:$0xff] %v357
      %390 = vst [vmem:[%s199 + $0x20] sm:$0xff] %v358
      %391 = vst [vmem:[%s199 + $0x28] sm:$0xff] %v359
      %392 = vst [vmem:[%s199 + $0x30] sm:$0xff] %v360
      %393 = vst [vmem:[%s199 + $0x38] sm:$0xff] %v361
      %394 = vst [vmem:[%s199 + $0x40] sm:$0xff] %v362
      %395 = vst [vmem:[%s199 + $0x48] sm:$0xff] %v363
      %396 = vst [vmem:[%s199 + $0x50] sm:$0xff] %v364
      %397 = vst [vmem:[%s199 + $0x58] sm:$0xff] %v365
      %398 = vst [vmem:[%s199 + $0x60] sm:$0xff] %v366
      %399 = vst [vmem:[%s199 + $0x68] sm:$0xff] %v367
      %400 = vst [vmem:[%s199 + $0x70] sm:$0xff] %v368
      %401 = vst [vmem:[%s199 + $0x78] sm:$0xff] %v369
      %402 = vst [vmem:[%s199 + $0x80] sm:$0xff] %v370
      %403 = vst [vmem:[%s199 + $0x88] sm:$0xff] %v371
      %404 = vst [vmem:[%s199 + $0x90] sm:$0xff] %v372
      %405 = vst [vmem:[%s199 + $0x98] sm:$0xff] %v373
      %406 = vst [vmem:[%s199 + $0xa0] sm:$0xff] %v374
      %407 = vst [vmem:[%s199 + $0xa8] sm:$0xff] %v375
      %408 = vst [vmem:[%s199 + $0xb0] sm:$0xff] %v376
      %409 = vst [vmem:[%s199 + $0xb8] sm:$0xff] %v377
      %410 = vst [vmem:[%s199 + $0xc0] sm:$0xff] %v378
      %411 = vst [vmem:[%s199 + $0xc8] sm:$0xff] %v379
      %412 = vst [vmem:[%s199 + $0xd0] sm:$0xff] %v380
      %413 = vst [vmem:[%s199 + $0xd8] sm:$0xff] %v381
      %414 = vst [vmem:[%s199 + $0xe0] sm:$0xff] %v382
      %415 = vst [vmem:[%s199 + $0xe8] sm:$0xff] %v383
      %416 = vst [vmem:[%s199 + $0xf0] sm:$0xff] %v384
      %417 = vst [vmem:[%s199 + $0xf8] sm:$0xff] %v385
      %s418 = smul.u32 32, %s15
      %p419 = scmp.lt.s32.totalorder %s418, 95
      %s420 = scalar_select %p419, %s418, 95
      %s421 = smul.addr %s420, 8
      %s422 = scalar_lea.vmem %s4, %s421
      // Predicated region
      $region37: #{protein_module_forward.7} parent=35 // pred_check
        %p423 = pneg %p122
      $region38: #{protein_module_forward.7} parent=35 // pred_check_branch
        %425 = sbr.rel (%p423) target = $region40
      $region39: #{protein_module_forward.7} parent=35 // pred_region
        %s426 = smul.u32 32, %s15
      $region40: #{protein_module_forward.7} parent=35 // pred_fallthru
        _
    $region36: #{protein_module_forward.7} parent=5 // pred_fallthru
      _
    %p427 = scmp.le.s32.totalorder 2, %s10
    // Predicated region
    $region41: #{protein_module_forward.7} parent=5 // pred_check
      %p428 = pneg %p427
    $region42: #{protein_module_forward.7} parent=5 // pred_check_branch
      %430 = sbr.rel (%p428) target = $region44
    $region43: #{protein_module_forward.7} parent=5 // pred_region
      %s431 = ssub.s32 %s10, 2
      // Predicated region
      $region45: #{protein_module_forward.7} parent=43 // pred_check
        %p432 = pneg %p128
      $region46: #{protein_module_forward.7} parent=43 // pred_check_branch
        %434 = sbr.rel (%p432) target = $region48
      $region47: #{protein_module_forward.7} parent=43 // pred_region
        %s435 = smul.u32 32, %s16
        %p436 = scmp.lt.s32.totalorder %s435, 95
        %s437 = scalar_select %p436, %s435, 95
        %s438 = smul.addr %s437, 8
        %s439 = scalar_lea.vmem %s4, %s438
      $region48: #{protein_module_forward.7} parent=43 // pred_fallthru
        _
    $region44: #{protein_module_forward.7} parent=5 // pred_fallthru
      _
  $region6: #{protein_module_forward.7} parent=0 // loop_footer
    %s14 = sadd.s32 1, %s10
  $region7: #{protein_module_forward.7} parent=0 // loop_footer_branch
    %9 = sbr.rel target = $region3
  $region8: #{protein_module_forward.7} parent=0 // loop_exit
    _

// kernel: protein_module_forward.4
$region0: #{protein_module_forward.4}
  #allocation0 [shape = 'u32[]', space=smem, size = 0x4, offset = 0x4, fixed_abs, tag = 'smem constant byte address 0x4 - core index']
  #allocation1 [shape = 'u32[72,128]{1,0:T(1,128)}', space=vmem, size = 0x9000, scoped, tag = 'internal scratch']
  #allocation2 [shape = 'f32[256,128]{1,0:T(8,128)}', space=vmem, size = 0x20000, scoped, tag = 'scratch operand']
  #allocation3 [shape = 's32[1]{0}', space=sflag, size = 0x4, scoped, tag = 'scoped memory for protein_module_forward.4']
  #allocation4 [shape = 'u8[2048]{0}', space=smem, size = 0x800, scoped, tag = 'prefetched SMEM operand 0']
  #allocation5 [shape = 'u8[512]{0}', space=smem, size = 0x200, scoped, tag = 'prefetched SMEM operand 1']
  %s0 = inlined_call_operand.vmem [shape: s32[3,3], index: 0, kind: input, shape index: {}]
  %s1 = inlined_call_operand.vmem [shape: s32[3], index: 1, kind: input, shape index: {}]
  %s2 = inlined_call_operand.vmem [shape: bf16[768,768], index: 2, kind: input, shape index: {}]
  %s3 = inlined_call_operand.vmem [shape: bf16[768,128], index: 3, kind: input, shape index: {}]
  %s4 = inlined_call_operand.vmem [shape: f32[768,1], index: 4, kind: input, shape index: {}]
  %s5 = inlined_call_operand.vmem [shape: f32[768,128], index: 5, kind: output, shape index: {0}]
  %s6 = inlined_call_operand.vmem [shape: f32[3,2,128], index: 6, kind: output, shape index: {1}]
  %7 = xla_tuple %s5, %s6
  %s8 = sld [smem:[#allocation0]]
  $region103: #{protein_module_forward.4} parent=0
    _
  %s10 = ssub.s32 1, %s8
  %s11 = scalar_select 0, %s10, %s8
  %s13 = sshll.u32 %s0, 4
  %s14 = int_to_ptr.vmem [resolvable:$true] %s13
  %16 = dma.vmem_to_smem %s14, 64, [#allocation4], [#allocation3]
  %s18 = sshll.u32 %s1, 4
  %s19 = int_to_ptr.vmem [resolvable:$true] %s18
  %21 = dma.vmem_to_smem %s19, 16, [#allocation5], [#allocation3]
  %23 = dma.done [#allocation3], 80
  %24 = sfence
  $region1: #{protein_module_forward.4} parent=0
    #allocation6 [shape = 'u8[262144]{0}', space=vmem, size = 0x40000, scoped, tag = 'input window, operand 2']
    loop: start=0, step=1, limit=11
    $region2: #{protein_module_forward.4} parent=1 // loop_pre_header
      _
    $region3: #{protein_module_forward.4} parent=1 // loop_header
      %s26 = sphi 0, %s30
      %p27 = scmp.ge.s32.totalorder %s26, 11
      %s33 = sphi 0, %s45
      %s34 = sphi 0, %s41
      %s35 = sphi 0, %s33
      %s36 = sphi 0, %s34
      %s37 = sphi 0, %s35
      %s38 = sphi 0, %s36
      %s66 = sphi 0, %s68
      %s69 = sphi 0, %s66
      %s70 = sphi 0, %s69
      %s86 = sphi 0, %s70
      %s108 = sphi 0, %s110
      %s111 = sphi 0, %s108
      %s112 = sphi 0, %s111
      %s128 = sphi 0, %s112
      %s134 = sphi 0, %s136
      %s137 = sphi 0, %s134
      %s138 = sphi 0, %s137
      %s154 = sphi 0, %s138
      %s160 = sphi 0, %s162
      %s163 = sphi 0, %s160
      %s164 = sphi 0, %s163
      %s180 = sphi 0, %s164
      %s186 = sphi 0, %s188
      %s189 = sphi 0, %s186
      %s190 = sphi 0, %s189
      %s206 = sphi 0, %s190
    $region4: #{protein_module_forward.4} parent=1 // loop_header_branch
      %29 = sbr.rel (%p27) target = $region8
    $region5: #{protein_module_forward.4} parent=1 // loop_body
      %s31 = ssub.s32 %s26, 1
      %s32 = ssub.s32 %s26, 2
      %s39 = sadd.s32 1, %s34
      %p40 = scmp.ge.s32.totalorder %s39, 3
      %s41 = scalar_select %p40, 0, %s39
      %s42 = sadd.s32 1, %s33
      %s43 = scalar_select %p40, %s42, %s33
      %p44 = scmp.ge.s32.totalorder %s43, 3
      %s45 = scalar_select %p44, 0, %s43
      %s46 = sshra.s32 %s34, 7
      %s47 = sand.u32 %s34, 127
      %s48 = sadd.s32 %s46, %s33
      %s49 = smul.u32 %s48, 128
      %s50 = sshra.s32 %s34, 7
      %s51 = sand.u32 %s34, 127
      %s52 = sadd.s32 %s49, %s51
      %s53 = sld [smem:[#allocation4 + %s52]]
      %s54 = sshra.s32 %s41, 7
      %s55 = sand.u32 %s41, 127
      %s56 = sadd.s32 %s54, %s45
      %s57 = smul.u32 %s56, 128
      %s58 = sshra.s32 %s41, 7
      %s59 = sand.u32 %s41, 127
      %s60 = sadd.s32 %s57, %s59
      %s61 = sld [smem:[#allocation4 + %s60]]
      %s62 = ssub.s32 %s33, %s45
      %s63 = ssub.s32 %s53, %s61
      %s64 = sor.u32 %s62, %s63
      %p65 = scmp.eq.s32.totalorder %s64, 0
      %s67 = sadd.s32 %s66, 1
      %s68 = scalar_select %p65, %s66, %s67
      %p71 = pneg %p65
      %p72 = scmp.eq.s32.totalorder %s26, 8
      %p73 = por %p71, %p72
      %p74 = scmp.ne.s32.totalorder %s66, %s69
      %p75 = scmp.eq.s32.totalorder %s26, 0
      %p76 = por %p74, %p75
      %p77 = scmp.ne.s32.totalorder %s66, %s69
      %p78 = scmp.eq.s32.totalorder %s31, 8
      %p79 = por %p77, %p78
      %p80 = scmp.ne.s32.totalorder %s69, %s70
      %p81 = scmp.eq.s32.totalorder %s31, 0
      %p82 = por %p80, %p81
      %p83 = scmp.ne.s32.totalorder %s69, %s70
      %p84 = scmp.eq.s32.totalorder %s32, 8
      %p85 = por %p83, %p84
      %p87 = scmp.ne.s32.totalorder %s70, %s86
      %p88 = scmp.eq.s32.totalorder %s32, 0
      %p89 = por %p87, %p88
      %s90 = sshra.s32 %s34, 7
      %s91 = sand.u32 %s34, 127
      %s92 = sadd.s32 %s90, %s33
      %s93 = smul.u32 %s92, 128
      %s94 = sshra.s32 %s34, 7
      %s95 = sand.u32 %s34, 127
      %s96 = sadd.s32 %s93, %s95
      %s97 = sld [smem:[#allocation4 + %s96]]
      %s98 = sshra.s32 %s41, 7
      %s99 = sand.u32 %s41, 127
      %s100 = sadd.s32 %s98, %s45
      %s101 = smul.u32 %s100, 128
      %s102 = sshra.s32 %s41, 7
      %s103 = sand.u32 %s41, 127
      %s104 = sadd.s32 %s101, %s103
      %s105 = sld [smem:[#allocation4 + %s104]]
      %s106 = ssub.s32 %s97, %s105
      %p107 = scmp.eq.s32.totalorder %s106, 0
      %s109 = sadd.s32 %s108, 1
      %s110 = scalar_select %p107, %s108, %s109
      %p113 = pneg %p107
      %p114 = scmp.eq.s32.totalorder %s26, 8
      %p115 = por %p113, %p114
      %p116 = scmp.ne.s32.totalorder %s108, %s111
      %p117 = scmp.eq.s32.totalorder %s26, 0
      %p118 = por %p116, %p117
      %p119 = scmp.ne.s32.totalorder %s108, %s111
      %p120 = scmp.eq.s32.totalorder %s31, 8
      %p121 = por %p119, %p120
      %p122 = scmp.ne.s32.totalorder %s111, %s112
      %p123 = scmp.eq.s32.totalorder %s31, 0
      %p124 = por %p122, %p123
      %p125 = scmp.ne.s32.totalorder %s111, %s112
      %p126 = scmp.eq.s32.totalorder %s32, 8
      %p127 = por %p125, %p126
      %p129 = scmp.ne.s32.totalorder %s112, %s128
      %p130 = scmp.eq.s32.totalorder %s32, 0
      %p131 = por %p129, %p130
      %s132 = ssub.s32 %s33, %s45
      %p133 = scmp.eq.s32.totalorder %s132, 0
      %s135 = sadd.s32 %s134, 1
      %s136 = scalar_select %p133, %s134, %s135
      %p139 = pneg %p133
      %p140 = scmp.eq.s32.totalorder %s26, 8
      %p141 = por %p139, %p140
      %p142 = scmp.ne.s32.totalorder %s134, %s137
      %p143 = scmp.eq.s32.totalorder %s26, 0
      %p144 = por %p142, %p143
      %p145 = scmp.ne.s32.totalorder %s134, %s137
      %p146 = scmp.eq.s32.totalorder %s31, 8
      %p147 = por %p145, %p146
      %p148 = scmp.ne.s32.totalorder %s137, %s138
      %p149 = scmp.eq.s32.totalorder %s31, 0
      %p150 = por %p148, %p149
      %p151 = scmp.ne.s32.totalorder %s137, %s138
      %p152 = scmp.eq.s32.totalorder %s32, 8
      %p153 = por %p151, %p152
      %p155 = scmp.ne.s32.totalorder %s138, %s154
      %p156 = scmp.eq.s32.totalorder %s32, 0
      %p157 = por %p155, %p156
      %s158 = ssub.s32 %s33, %s45
      %p159 = scmp.eq.s32.totalorder %s158, 0
      %s161 = sadd.s32 %s160, 1
      %s162 = scalar_select %p159, %s160, %s161
      %p165 = pneg %p159
      %p166 = scmp.eq.s32.totalorder %s26, 8
      %p167 = por %p165, %p166
      %p168 = scmp.ne.s32.totalorder %s160, %s163
      %p169 = scmp.eq.s32.totalorder %s26, 0
      %p170 = por %p168, %p169
      %p171 = scmp.ne.s32.totalorder %s160, %s163
      %p172 = scmp.eq.s32.totalorder %s31, 8
      %p173 = por %p171, %p172
      %p174 = scmp.ne.s32.totalorder %s163, %s164
      %p175 = scmp.eq.s32.totalorder %s31, 0
      %p176 = por %p174, %p175
      %p177 = scmp.ne.s32.totalorder %s163, %s164
      %p178 = scmp.eq.s32.totalorder %s32, 8
      %p179 = por %p177, %p178
      %p181 = scmp.ne.s32.totalorder %s164, %s180
      %p182 = scmp.eq.s32.totalorder %s32, 0
      %p183 = por %p181, %p182
      %s184 = ssub.s32 %s33, %s45
      %p185 = scmp.eq.s32.totalorder %s184, 0
      %s187 = sadd.s32 %s186, 1
      %s188 = scalar_select %p185, %s186, %s187
      %p191 = pneg %p185
      %p192 = scmp.eq.s32.totalorder %s26, 8
      %p193 = por %p191, %p192
      %p194 = scmp.ne.s32.totalorder %s186, %s189
      %p195 = scmp.eq.s32.totalorder %s26, 0
      %p196 = por %p194, %p195
      %p197 = scmp.ne.s32.totalorder %s186, %s189
      %p198 = scmp.eq.s32.totalorder %s31, 8
      %p199 = por %p197, %p198
      %p200 = scmp.ne.s32.totalorder %s189, %s190
      %p201 = scmp.eq.s32.totalorder %s31, 0
      %p202 = por %p200, %p201
      %p203 = scmp.ne.s32.totalorder %s189, %s190
      %p204 = scmp.eq.s32.totalorder %s32, 8
      %p205 = por %p203, %p204
      %p207 = scmp.ne.s32.totalorder %s190, %s206
      %p208 = scmp.eq.s32.totalorder %s32, 0
      %p209 = por %p207, %p208
      %p210 = scmp.le.s32.totalorder 1, %s26
      %p211 = scmp.lt.s32.totalorder %s26, 10
      %p212 = pnand %p210, %p211
      %p213 = pneg %p212
      // Predicated region
      $region9: #{protein_module_forward.4} parent=5 // pred_check
        _
      $region10: #{protein_module_forward.4} parent=5 // pred_check_branch
        %215 = sbr.rel (%p212) target = $region12
      $region11: #{protein_module_forward.4} parent=5 // pred_region
        %s216 = ssub.s32 %s26, 1
      $region12: #{protein_module_forward.4} parent=5 // pred_fallthru
        _
      %p217 = scmp.lt.s32.totalorder %s26, 9
      // Predicated region
      $region13: #{protein_module_forward.4} parent=5 // pred_check
        %p218 = pneg %p217
      $region14: #{protein_module_forward.4} parent=5 // pred_check_branch
        %220 = sbr.rel (%p218) target = $region16
      $region15: #{protein_module_forward.4} parent=5 // pred_region
        // Predicated region
        $region17: #{protein_module_forward.4} parent=15 // pred_check
          %p221 = pneg %p76
        $region18: #{protein_module_forward.4} parent=15 // pred_check_branch
          %223 = sbr.rel (%p221) target = $region20
        $region19: #{protein_module_forward.4} parent=15 // pred_region
          %s224 = sand.u32 %s66, 1
          %s225 = sand.u32 %s66, 1
          %s226 = smul.addr %s225, 256
          %s227 = scalar_lea.vmem [#allocation6], %s226
          %s228 = sshra.s32 %s34, 7
          %s229 = sand.u32 %s34, 127
          %s230 = sadd.s32 %s228, %s33
          %s231 = smul.u32 %s230, 128
          %s232 = sshra.s32 %s34, 7
          %s233 = sand.u32 %s34, 127
          %s234 = sadd.s32 %s231, %s233
          %s235 = sld [smem:[#allocation4 + %s234]]
          %s236 = smul.u32 32, %s33
          %s237 = smul.u32 2, %s235
          %s238 = smul.addr %s236, 6
          %s239 = sadd.s32 %s237, %s238
          %s240 = smul.addr %s239, 4
          %s241 = scalar_lea.vmem %s2, %s240
          // Predicated region
          $region21: #{protein_module_forward.4} parent=19 // pred_check
            _
          $region22: #{protein_module_forward.4} parent=19 // pred_check_branch
            %243 = sbr.rel (0) target = $region24
          $region23: #{protein_module_forward.4} parent=19 // pred_region
            // Predicated region
            $region25: #{protein_module_forward.4} parent=23 // pred_check
              _
            $region26: #{protein_module_forward.4} parent=23 // pred_check_branch
              %245 = sbr.rel (0) target = $region28
            $region27: #{protein_module_forward.4} parent=23 // pred_region
              // Predicated region
              $region40: #{protein_module_forward.4} parent=27 // pred_check
                _
              $region41: #{protein_module_forward.4} parent=27 // pred_check_branch
                %323 = sbr.rel (0) target = $region43
              $region42: #{protein_module_forward.4} parent=27 // pred_region
                loop: start=0, step=1, limit=1
                $region44: #{protein_module_forward.4} parent=42 // loop_pre_header
                  _
                $region45: #{protein_module_forward.4} parent=42 // loop_header
                  %s325 = sphi 0, %s329
                  %p326 = scmp.ge.s32.totalorder %s325, 1
                  %s330 = sphi %s241, %s241
                  %s331 = sphi %s227, %s227
                $region46: #{protein_module_forward.4} parent=42 // loop_header_branch
                  %328 = sbr.rel (%p326) target = $region50
                $region47: #{protein_module_forward.4} parent=42 // loop_body
                  %v332 = vld [vmem:[%s330] sm:$0xff]
                  %333 = vst [vmem:[%s331] sm:$0xff] %v332
                  %v334 = vld [vmem:[%s330 + $0x18] sm:$0xff]
                  %335 = vst [vmem:[%s331 + $0x8] sm:$0xff] %v334
                  %v336 = vld [vmem:[%s330 + $0x30] sm:$0xff]
                  %337 = vst [vmem:[%s331 + $0x10] sm:$0xff] %v336
                  %v338 = vld [vmem:[%s330 + $0x48] sm:$0xff]
                  %339 = vst [vmem:[%s331 + $0x18] sm:$0xff] %v338
                  %v340 = vld [vmem:[%s330 + $0x60] sm:$0xff]
                  %341 = vst [vmem:[%s331 + $0x20] sm:$0xff] %v340
                  %v342 = vld [vmem:[%s330 + $0x78] sm:$0xff]
                  %343 = vst [vmem:[%s331 + $0x28] sm:$0xff] %v342
                  %v344 = vld [vmem:[%s330 + $0x90] sm:$0xff]
                  %345 = vst [vmem:[%s331 + $0x30] sm:$0xff] %v344
                  %v346 = vld [vmem:[%s330 + $0xa8] sm:$0xff]
                  %347 = vst [vmem:[%s331 + $0x38] sm:$0xff] %v346
                  %v348 = vld [vmem:[%s330 + $0xc0] sm:$0xff]
                  %349 = vst [vmem:[%s331 + $0x40] sm:$0xff] %v348
                  %v350 = vld [vmem:[%s330 + $0xd8] sm:$0xff]
                  %351 = vst [vmem:[%s331 + $0x48] sm:$0xff] %v350
                  %v352 = vld [vmem:[%s330 + $0xf0] sm:$0xff]
                  %353 = vst [vmem:[%s331 + $0x50] sm:$0xff] %v352
                  %v354 = vld [vmem:[%s330 + $0x108] sm:$0xff]
                  %355 = vst [vmem:[%s331 + $0x58] sm:$0xff] %v354
                  %v356 = vld [vmem:[%s330 + $0x120] sm:$0xff]
                  %357 = vst [vmem:[%s331 + $0x60] sm:$0xff] %v356
                  %v358 = vld [vmem:[%s330 + $0x138] sm:$0xff]
                  %359 = vst [vmem:[%s331 + $0x68] sm:$0xff] %v358
                  %v360 = vld [vmem:[%s330 + $0x150] sm:$0xff]
                  %361 = vst [vmem:[%s331 + $0x70] sm:$0xff] %v360
                  %v362 = vld [vmem:[%s330 + $0x168] sm:$0xff]
                  %363 = vst [vmem:[%s331 + $0x78] sm:$0xff] %v362
                  %v364 = vld [vmem:[%s330 + $0x180] sm:$0xff]
                  %365 = vst [vmem:[%s331 + $0x80] sm:$0xff] %v364
                  %v366 = vld [vmem:[%s330 + $0x198] sm:$0xff]
                  %367 = vst [vmem:[%s331 + $0x88] sm:$0xff] %v366
                  %v368 = vld [vmem:[%s330 + $0x1b0] sm:$0xff]
                  %369 = vst [vmem:[%s331 + $0x90] sm:$0xff] %v368
                  %v370 = vld [vmem:[%s330 + $0x1c8] sm:$0xff]
                  %371 = vst [vmem:[%s331 + $0x98] sm:$0xff] %v370
                  %v372 = vld [vmem:[%s330 + $0x1e0] sm:$0xff]
                  %373 = vst [vmem:[%s331 + $0xa0] sm:$0xff] %v372
                  %v374 = vld [vmem:[%s330 + $0x1f8] sm:$0xff]
                  %375 = vst [vmem:[%s331 + $0xa8] sm:$0xff] %v374
                  %v376 = vld [vmem:[%s330 + $0x210] sm:$0xff]
                  %377 = vst [vmem:[%s331 + $0xb0] sm:$0xff] %v376
                  %v378 = vld [vmem:[%s330 + $0x228] sm:$0xff]
                  %379 = vst [vmem:[%s331 + $0xb8] sm:$0xff] %v378
                  %v380 = vld [vmem:[%s330 + $0x240] sm:$0xff]
                  %381 = vst [vmem:[%s331 + $0xc0] sm:$0xff] %v380
                  %v382 = vld [vmem:[%s330 + $0x258] sm:$0xff]
                  %383 = vst [vmem:[%s331 + $0xc8] sm:$0xff] %v382
                  %v384 = vld [vmem:[%s330 + $0x270] sm:$0xff]
                  %385 = vst [vmem:[%s331 + $0xd0] sm:$0xff] %v384
                  %v386 = vld [vmem:[%s330 + $0x288] sm:$0xff]
                  %387 = vst [vmem:[%s331 + $0xd8] sm:$0xff] %v386
                  %v388 = vld [vmem:[%s330 + $0x2a0] sm:$0xff]
                  %389 = vst [vmem:[%s331 + $0xe0] sm:$0xff] %v388
                  %v390 = vld [vmem:[%s330 + $0x2b8] sm:$0xff]
                  %391 = vst [vmem:[%s331 + $0xe8] sm:$0xff] %v390
                  %v392 = vld [vmem:[%s330 + $0x2d0] sm:$0xff]
                  %393 = vst [vmem:[%s331 + $0xf0] sm:$0xff] %v392
                  %v394 = vld [vmem:[%s330 + $0x2e8] sm:$0xff]
                  %395 = vst [vmem:[%s331 + $0xf8] sm:$0xff] %v394
                $region48: #{protein_module_forward.4} parent=42 // loop_footer
                  %s329 = sadd.s32 1, %s325
                $region49: #{protein_module_forward.4} parent=42 // loop_footer_branch
                  %324 = sbr.rel target = $region45
                $region50: #{protein_module_forward.4} parent=42 // loop_exit
                  _
              $region43: #{protein_module_forward.4} parent=27 // pred_fallthru
                _
              // Predicated region
              $region51: #{protein_module_forward.4} parent=27 // pred_check
                _
              $region52: #{protein_module_forward.4} parent=27 // pred_check_branch
                %397 = sbr.rel target = $region54
              $region53: #{protein_module_forward.4} parent=27 // pred_region
                _
              $region54: #{protein_module_forward.4} parent=27 // pred_fallthru
                _
            $region28: #{protein_module_forward.4} parent=23 // pred_fallthru
              _
            // Predicated region
            $region29: #{protein_module_forward.4} parent=23 // pred_check
              _
            $region30: #{protein_module_forward.4} parent=23 // pred_check_branch
              %247 = sbr.rel target = $region32
            $region31: #{protein_module_forward.4} parent=23 // pred_region
              %s249 = ssub.s32 256, 1
              loop: start=0, step=1, limit=1
              $region33: #{protein_module_forward.4} parent=31 // loop_pre_header
                _
              $region34: #{protein_module_forward.4} parent=31 // loop_header
                %s251 = sphi 0, %s255
                %p252 = scmp.ge.s32.totalorder %s251, 1
                %s256 = sphi %s241, %s241
                %s257 = sphi %s227, %s227
              $region35: #{protein_module_forward.4} parent=31 // loop_header_branch
                %254 = sbr.rel (%p252) target = $region39
              $region36: #{protein_module_forward.4} parent=31 // loop_body
                %v258 = vld [vmem:[%s256] sm:%s249]
                %259 = vst [vmem:[%s257] sm:%s249] %v258
                %v260 = vld [vmem:[%s256 + $0x18] sm:%s249]
                %261 = vst [vmem:[%s257 + $0x8] sm:%s249] %v260
                %v262 = vld [vmem:[%s256 + $0x30] sm:%s249]
                %263 = vst [vmem:[%s257 + $0x10] sm:%s249] %v262
                %v264 = vld [vmem:[%s256 + $0x48] sm:%s249]
                %265 = vst [vmem:[%s257 + $0x18] sm:%s249] %v264
                %v266 = vld [vmem:[%s256 + $0x60] sm:%s249]
                %267 = vst [vmem:[%s257 + $0x20] sm:%s249] %v266
                %v268 = vld [vmem:[%s256 + $0x78] sm:%s249]
                %269 = vst [vmem:[%s257 + $0x28] sm:%s249] %v268
                %v270 = vld [vmem:[%s256 + $0x90] sm:%s249]
                %271 = vst [vmem:[%s257 + $0x30] sm:%s249] %v270
                %v272 = vld [vmem:[%s256 + $0xa8] sm:%s249]
                %273 = vst [vmem:[%s257 + $0x38] sm:%s249] %v272
                %v274 = vld [vmem:[%s256 + $0xc0] sm:%s249]
                %275 = vst [vmem:[%s257 + $0x40] sm:%s249] %v274
                %v276 = vld [vmem:[%s256 + $0xd8] sm:%s249]
                %277 = vst [vmem:[%s257 + $0x48] sm:%s249] %v276
                %v278 = vld [vmem:[%s256 + $0xf0] sm:%s249]
                %279 = vst [vmem:[%s257 + $0x50] sm:%s249] %v278
                %v280 = vld [vmem:[%s256 + $0x108] sm:%s249]
                %281 = vst [vmem:[%s257 + $0x58] sm:%s249] %v280
                %v282 = vld [vmem:[%s256 + $0x120] sm:%s249]
                %283 = vst [vmem:[%s257 + $0x60] sm:%s249] %v282
                %v284 = vld [vmem:[%s256 + $0x138] sm:%s249]
                %285 = vst [vmem:[%s257 + $0x68] sm:%s249] %v284
                %v286 = vld [vmem:[%s256 + $0x150] sm:%s249]
                %287 = vst [vmem:[%s257 + $0x70] sm:%s249] %v286
                %v288 = vld [vmem:[%s256 + $0x168] sm:%s249]
                %289 = vst [vmem:[%s257 + $0x78] sm:%s249] %v288
                %v290 = vld [vmem:[%s256 + $0x180] sm:%s249]
                %291 = vst [vmem:[%s257 + $0x80] sm:%s249] %v290
                %v292 = vld [vmem:[%s256 + $0x198] sm:%s249]
                %293 = vst [vmem:[%s257 + $0x88] sm:%s249] %v292
                %v294 = vld [vmem:[%s256 + $0x1b0] sm:%s249]
                %295 = vst [vmem:[%s257 + $0x90] sm:%s249] %v294
                %v296 = vld [vmem:[%s256 + $0x1c8] sm:%s249]
                %297 = vst [vmem:[%s257 + $0x98] sm:%s249] %v296
                %v298 = vld [vmem:[%s256 + $0x1e0] sm:%s249]
                %299 = vst [vmem:[%s257 + $0xa0] sm:%s249] %v298
                %v300 = vld [vmem:[%s256 + $0x1f8] sm:%s249]
                %301 = vst [vmem:[%s257 + $0xa8] sm:%s249] %v300
                %v302 = vld [vmem:[%s256 + $0x210] sm:%s249]
                %303 = vst [vmem:[%s257 + $0xb0] sm:%s249] %v302
                %v304 = vld [vmem:[%s256 + $0x228] sm:%s249]
                %305 = vst [vmem:[%s257 + $0xb8] sm:%s249] %v304
                %v306 = vld [vmem:[%s256 + $0x240] sm:%s249]
                %307 = vst [vmem:[%s257 + $0xc0] sm:%s249] %v306
                %v308 = vld [vmem:[%s256 + $0x258] sm:%s249]
                %309 = vst [vmem:[%s257 + $0xc8] sm:%s249] %v308
                %v310 = vld [vmem:[%s256 + $0x270] sm:%s249]
                %311 = vst [vmem:[%s257 + $0xd0] sm:%s249] %v310
                %v312 = vld [vmem:[%s256 + $0x288] sm:%s249]
                %313 = vst [vmem:[%s257 + $0xd8] sm:%s249] %v312
                %v314 = vld [vmem:[%s256 + $0x2a0] sm:%s249]
                %315 = vst [vmem:[%s257 + $0xe0] sm:%s249] %v314
                %v316 = vld [vmem:[%s256 + $0x2b8] sm:%s249]
                %317 = vst [vmem:[%s257 + $0xe8] sm:%s249] %v316
                %v318 = vld [vmem:[%s256 + $0x2d0] sm:%s249]
                %319 = vst [vmem:[%s257 + $0xf0] sm:%s249] %v318
                %v320 = vld [vmem:[%s256 + $0x2e8] sm:%s249]
                %321 = vst [vmem:[%s257 + $0xf8] sm:%s249] %v320
              $region37: #{protein_module_forward.4} parent=31 // loop_footer
                %s255 = sadd.s32 1, %s251
              $region38: #{protein_module_forward.4} parent=31 // loop_footer_branch
                %250 = sbr.rel target = $region34
              $region39: #{protein_module_forward.4} parent=31 // loop_exit
                _
            $region32: #{protein_module_forward.4} parent=23 // pred_fallthru
              _
          $region24: #{protein_module_forward.4} parent=19 // pred_fallthru
            _
          %398 = vnop
        $region20: #{protein_module_forward.4} parent=15 // pred_fallthru
          _
        // Predicated region
        $region55: #{protein_module_forward.4} parent=15 // pred_check
          %p399 = pneg %p118
        $region56: #{protein_module_forward.4} parent=15 // pred_check_branch
          %401 = sbr.rel (%p399) target = $region58
        $region57: #{protein_module_forward.4} parent=15 // pred_region
          %s402 = sshra.s32 %s34, 7
          %s403 = sand.u32 %s34, 127
          %s404 = sadd.s32 %s402, %s33
          %s405 = smul.u32 %s404, 128
          %s406 = sshra.s32 %s34, 7
          %s407 = sand.u32 %s34, 127
          %s408 = sadd.s32 %s405, %s407
          %s409 = sld [smem:[#allocation4 + %s408]]
          %s410 = smul.u32 32, %s409
          %p411 = scmp.lt.s32.totalorder %s410, 95
          %s412 = scalar_select %p411, %s410, 95
          %s413 = smul.addr %s412, 4
          %s414 = scalar_lea.vmem %s3, %s413
          %s415 = sshra.s32 %s34, 7
          %s416 = sand.u32 %s34, 127
          %s417 = sadd.s32 %s415, %s33
          %s418 = smul.u32 %s417, 128
          %s419 = sshra.s32 %s34, 7
          %s420 = sand.u32 %s34, 127
          %s421 = sadd.s32 %s418, %s420
          %s422 = sld [smem:[#allocation4 + %s421]]
          %s423 = smul.u32 32, %s422
        $region58: #{protein_module_forward.4} parent=15 // pred_fallthru
          _
        // Predicated region
        $region59: #{protein_module_forward.4} parent=15 // pred_check
          %p424 = pneg %p144
        $region60: #{protein_module_forward.4} parent=15 // pred_check_branch
          %426 = sbr.rel (%p424) target = $region62
        $region61: #{protein_module_forward.4} parent=15 // pred_region
          %s427 = smul.u32 32, %s33
          %p428 = scmp.lt.s32.totalorder %s427, 95
          %s429 = scalar_select %p428, %s427, 95
          %s430 = smul.addr %s429, 8
          %s431 = scalar_lea.vmem %s4, %s430
          %s432 = smul.u32 32, %s33
        $region62: #{protein_module_forward.4} parent=15 // pred_fallthru
          _
      $region16: #{protein_module_forward.4} parent=5 // pred_fallthru
        _
      %p433 = scmp.le.s32.totalorder 1, %s26
      %p434 = scmp.lt.s32.totalorder %s26, 10
      %p435 = pnand %p433, %p434
      %p436 = pneg %p435
      // Predicated region
      $region63: #{protein_module_forward.4} parent=5 // pred_check
        _
      $region64: #{protein_module_forward.4} parent=5 // pred_check_branch
        %438 = sbr.rel (%p435) target = $region66
      $region65: #{protein_module_forward.4} parent=5 // pred_region
        %s439 = ssub.s32 %s26, 1
        %s440 = sand.u32 %s69, 1
        %s441 = sand.u32 %s69, 1
        %s442 = smul.addr %s441, 256
        %s443 = scalar_lea.vmem [#allocation6], %s442
        // Predicated region
        $region67: #{protein_module_forward.4} parent=65 // pred_check
          %p444 = pneg %p82
        $region68: #{protein_module_forward.4} parent=65 // pred_check_branch
          %446 = sbr.rel (%p444) target = $region70
        $region69: #{protein_module_forward.4} parent=65 // pred_region
          _
        $region70: #{protein_module_forward.4} parent=65 // pred_fallthru
          _
        %s447 = sand.u32 %s69, 1
        %s448 = sand.u32 %s69, 1
        %s449 = smul.addr %s448, 256
        %s450 = scalar_lea.vmem [#allocation6], %s449
        %p451 = pneg %p82
        %p452 = pneg %p79
        %s453 = sshra.s32 %s36, 7
        %s454 = sand.u32 %s36, 127
        %s455 = sadd.s32 %s453, %s35
        %s456 = smul.u32 %s455, 128
        %s457 = sshra.s32 %s36, 7
        %s458 = sand.u32 %s36, 127
        %s459 = sadd.s32 %s456, %s458
        %s460 = sld [smem:[#allocation4 + %s459]]
        %s461 = smul.u32 32, %s460
        %p462 = scmp.lt.s32.totalorder %s461, 95
        %s463 = scalar_select %p462, %s461, 95
        %s464 = smul.addr %s463, 4
        %s465 = scalar_lea.vmem %s3, %s464
        %p466 = pneg %p124
        %p467 = pneg %p121
        %s468 = smul.u32 32, %s35
        %p469 = scmp.lt.s32.totalorder %s468, 95
        %s470 = scalar_select %p469, %s468, 95
        %s471 = smul.addr %s470, 8
        %s472 = scalar_lea.vmem %s4, %s471
        %p473 = pneg %p150
        %p474 = pneg %p147
        %p475 = pneg %p176
        %p476 = pneg %p173
        %s477 = smul.u32 32, %s35
        %p478 = scmp.lt.s32.totalorder %s477, 95
        %s479 = scalar_select %p478, %s477, 95
        %s480 = smul.addr %s479, 8
        %s481 = scalar_lea.vmem %s5, %s480
        %p482 = pneg %p202
        %p483 = pneg %p199
        %p484 = scmp.lt.s32.totalorder %s35, 2
        %s485 = scalar_select %p484, %s35, 2
        %s486 = smul.addr %s485, 2
        %s487 = scalar_lea.vmem %s6, %s486
        %s488 = sshra.s32 %s36, 7
        %s489 = sand.u32 %s36, 127
        %s490 = sadd.s32 %s488, %s35
        %s491 = smul.u32 %s490, 128
        %s492 = sshra.s32 %s36, 7
        %s493 = sand.u32 %s36, 127
        %s494 = sadd.s32 %s491, %s493
        %s495 = sld [smem:[#allocation4 + %s494]]
        %s496 = smul.u32 32, %s35
        %s497 = smul.u32 2, %s495
        %s498 = sshra.s32 %s36, 7
        %s499 = sand.u32 %s36, 127
        %s500 = sadd.s32 %s498, %s35
        %s501 = smul.u32 %s500, 128
        %s502 = sshra.s32 %s36, 7
        %s503 = sand.u32 %s36, 127
        %s504 = sadd.s32 %s501, %s503
        %s505 = sld [smem:[#allocation4 + %s504]]
        %s506 = smul.u32 32, %s505
        %p507 = scmp.lt.s32.totalorder %s506, 95
        %s508 = scalar_select %p507, %s506, 95
        %s509 = smul.addr %s508, 4
        %s510 = scalar_lea.vmem %s3, %s509
        %s511 = sshra.s32 %s36, 7
        %s512 = sand.u32 %s36, 127
        %s513 = sadd.s32 %s511, %s35
        %s514 = smul.u32 %s513, 128
        %s515 = sshra.s32 %s36, 7
        %s516 = sand.u32 %s36, 127
        %s517 = sadd.s32 %s514, %s516
        %s518 = sld [smem:[#allocation4 + %s517]]
        %s519 = smul.u32 32, %s518
        %s520 = smul.u32 32, %s35
        %p521 = scmp.lt.s32.totalorder %s520, 95
        %s522 = scalar_select %p521, %s520, 95
        %s523 = smul.addr %s522, 8
        %s524 = scalar_lea.vmem %s4, %s523
        %s525 = smul.u32 32, %s35
        %s526 = smul.u32 32, %s35
        %p527 = scmp.lt.s32.totalorder %s526, 95
        %s528 = scalar_select %p527, %s526, 95
        %s529 = smul.addr %s528, 8
        %s530 = scalar_lea.vmem %s5, %s529
        %s531 = smul.u32 32, %s35
        %p532 = scmp.lt.s32.totalorder %s35, 2
        %s533 = scalar_select %p532, %s35, 2
        %s534 = smul.addr %s533, 2
        %s535 = scalar_lea.vmem %s6, %s534
        %p536 = scmp.eq.s32.totalorder %s36, 0
        // Predicated region
        $region71: #{protein_module_forward.4} parent=65 // pred_check
          %p537 = pneg %p536
        $region72: #{protein_module_forward.4} parent=65 // pred_check_branch
          %539 = sbr.rel (%p537) target = $region74
        $region73: #{protein_module_forward.4} parent=65 // pred_region
          %540 = vst [vmem:[#allocation2] sm:$0xff] 0.0
          %541 = vst [vmem:[#allocation2 + $0x8] sm:$0xff] 0.0
          %542 = vst [vmem:[#allocation2 + $0x10] sm:$0xff] 0.0
          %543 = vst [vmem:[#allocation2 + $0x18] sm:$0xff] 0.0
          %544 = vst [vmem:[#allocation2 + $0x20] sm:$0xff] 0.0
          %545 = vst [vmem:[#allocation2 + $0x28] sm:$0xff] 0.0
          %546 = vst [vmem:[#allocation2 + $0x30] sm:$0xff] 0.0
          %547 = vst [vmem:[#allocation2 + $0x38] sm:$0xff] 0.0
          %548 = vst [vmem:[#allocation2 + $0x40] sm:$0xff] 0.0
          %549 = vst [vmem:[#allocation2 + $0x48] sm:$0xff] 0.0
          %550 = vst [vmem:[#allocation2 + $0x50] sm:$0xff] 0.0
          %551 = vst [vmem:[#allocation2 + $0x58] sm:$0xff] 0.0
          %552 = vst [vmem:[#allocation2 + $0x60] sm:$0xff] 0.0
          %553 = vst [vmem:[#allocation2 + $0x68] sm:$0xff] 0.0
          %554 = vst [vmem:[#allocation2 + $0x70] sm:$0xff] 0.0
          %555 = vst [vmem:[#allocation2 + $0x78] sm:$0xff] 0.0
          %556 = vst [vmem:[#allocation2 + $0x80] sm:$0xff] 0.0
          %557 = vst [vmem:[#allocation2 + $0x88] sm:$0xff] 0.0
          %558 = vst [vmem:[#allocation2 + $0x90] sm:$0xff] 0.0
          %559 = vst [vmem:[#allocation2 + $0x98] sm:$0xff] 0.0
          %560 = vst [vmem:[#allocation2 + $0xa0] sm:$0xff] 0.0
          %561 = vst [vmem:[#allocation2 + $0xa8] sm:$0xff] 0.0
          %562 = vst [vmem:[#allocation2 + $0xb0] sm:$0xff] 0.0
          %563 = vst [vmem:[#allocation2 + $0xb8] sm:$0xff] 0.0
          %564 = vst [vmem:[#allocation2 + $0xc0] sm:$0xff] 0.0
          %565 = vst [vmem:[#allocation2 + $0xc8] sm:$0xff] 0.0
          %566 = vst [vmem:[#allocation2 + $0xd0] sm:$0xff] 0.0
          %567 = vst [vmem:[#allocation2 + $0xd8] sm:$0xff] 0.0
          %568 = vst [vmem:[#allocation2 + $0xe0] sm:$0xff] 0.0
          %569 = vst [vmem:[#allocation2 + $0xe8] sm:$0xff] 0.0
          %570 = vst [vmem:[#allocation2 + $0xf0] sm:$0xff] 0.0
          %571 = vst [vmem:[#allocation2 + $0xf8] sm:$0xff] 0.0
        $region74: #{protein_module_forward.4} parent=65 // pred_fallthru
          _
        %s572 = sld [smem:[#allocation5 + %s35]]
        %p573 = scmp.lt.s32.totalorder %s36, %s572
        // Predicated region
        $region75: #{protein_module_forward.4} parent=65 // pred_check
          %p574 = pneg %p573
        $region76: #{protein_module_forward.4} parent=65 // pred_check_branch
          %576 = sbr.rel (%p574) target = $region78
        $region77: #{protein_module_forward.4} parent=65 // pred_region
          %v577 = vld [vmem:[#allocation2] sm:$0xff]
          %v578 = vld [vmem:[#allocation2 + $0x8] sm:$0xff]
          %v579 = vld [vmem:[#allocation2 + $0x10] sm:$0xff]
          %v580 = vld [vmem:[#allocation2 + $0x18] sm:$0xff]
          %v581 = vld [vmem:[#allocation2 + $0x20] sm:$0xff]
          %v582 = vld [vmem:[#allocation2 + $0x28] sm:$0xff]
          %v583 = vld [vmem:[#allocation2 + $0x30] sm:$0xff]
          %v584 = vld [vmem:[#allocation2 + $0x38] sm:$0xff]
          %v585 = vld [vmem:[#allocation2 + $0x40] sm:$0xff]
          %v586 = vld [vmem:[#allocation2 + $0x48] sm:$0xff]
          %v587 = vld [vmem:[#allocation2 + $0x50] sm:$0xff]
          %v588 = vld [vmem:[#allocation2 + $0x58] sm:$0xff]
          %v589 = vld [vmem:[#allocation2 + $0x60] sm:$0xff]
          %v590 = vld [vmem:[#allocation2 + $0x68] sm:$0xff]
          %v591 = vld [vmem:[#allocation2 + $0x70] sm:$0xff]
          %v592 = vld [vmem:[#allocation2 + $0x78] sm:$0xff]
          %v593 = vld [vmem:[#allocation2 + $0x80] sm:$0xff]
          %v594 = vld [vmem:[#allocation2 + $0x88] sm:$0xff]
          %v595 = vld [vmem:[#allocation2 + $0x90] sm:$0xff]
          %v596 = vld [vmem:[#allocation2 + $0x98] sm:$0xff]
          %v597 = vld [vmem:[#allocation2 + $0xa0] sm:$0xff]
          %v598 = vld [vmem:[#allocation2 + $0xa8] sm:$0xff]
          %v599 = vld [vmem:[#allocation2 + $0xb0] sm:$0xff]
          %v600 = vld [vmem:[#allocation2 + $0xb8] sm:$0xff]
          %v601 = vld [vmem:[#allocation2 + $0xc0] sm:$0xff]
          %v602 = vld [vmem:[#allocation2 + $0xc8] sm:$0xff]
          %v603 = vld [vmem:[#allocation2 + $0xd0] sm:$0xff]
          %v604 = vld [vmem:[#allocation2 + $0xd8] sm:$0xff]
          %v605 = vld [vmem:[#allocation2 + $0xe0] sm:$0xff]
          %v606 = vld [vmem:[#allocation2 + $0xe8] sm:$0xff]
          %v607 = vld [vmem:[#allocation2 + $0xf0] sm:$0xff]
          %v608 = vld [vmem:[#allocation2 + $0xf8] sm:$0xff]
          %v609 = vld [vmem:[%s443] sm:$0xff]
          %v610 = vld [vmem:[%s443 + $0x8] sm:$0xff]
          %v611 = vld [vmem:[%s443 + $0x10] sm:$0xff]
          %v612 = vld [vmem:[%s443 + $0x18] sm:$0xff]
          %v613 = vld [vmem:[%s443 + $0x20] sm:$0xff]
          %v614 = vld [vmem:[%s443 + $0x28] sm:$0xff]
          %v615 = vld [vmem:[%s443 + $0x30] sm:$0xff]
          %v616 = vld [vmem:[%s443 + $0x38] sm:$0xff]
          %v617 = vld [vmem:[%s443 + $0x40] sm:$0xff]
          %v618 = vld [vmem:[%s443 + $0x48] sm:$0xff]
          %v619 = vld [vmem:[%s443 + $0x50] sm:$0xff]
          %v620 = vld [vmem:[%s443 + $0x58] sm:$0xff]
          %v621 = vld [vmem:[%s443 + $0x60] sm:$0xff]
          %v622 = vld [vmem:[%s443 + $0x68] sm:$0xff]
          %v623 = vld [vmem:[%s443 + $0x70] sm:$0xff]
          %v624 = vld [vmem:[%s443 + $0x78] sm:$0xff]
          %v625 = vld [vmem:[%s443 + $0x80] sm:$0xff]
          %v626 = vld [vmem:[%s443 + $0x88] sm:$0xff]
          %v627 = vld [vmem:[%s443 + $0x90] sm:$0xff]
          %v628 = vld [vmem:[%s443 + $0x98] sm:$0xff]
          %v629 = vld [vmem:[%s443 + $0xa0] sm:$0xff]
          %v630 = vld [vmem:[%s443 + $0xa8] sm:$0xff]
          %v631 = vld [vmem:[%s443 + $0xb0] sm:$0xff]
          %v632 = vld [vmem:[%s443 + $0xb8] sm:$0xff]
          %v633 = vld [vmem:[%s443 + $0xc0] sm:$0xff]
          %v634 = vld [vmem:[%s443 + $0xc8] sm:$0xff]
          %v635 = vld [vmem:[%s443 + $0xd0] sm:$0xff]
          %v636 = vld [vmem:[%s443 + $0xd8] sm:$0xff]
          %v637 = vld [vmem:[%s443 + $0xe0] sm:$0xff]
          %v638 = vld [vmem:[%s443 + $0xe8] sm:$0xff]
          %v639 = vld [vmem:[%s443 + $0xf0] sm:$0xff]
          %v640 = vld [vmem:[%s443 + $0xf8] sm:$0xff]
          %v641 = vld [vmem:[%s510] sm:$0xf]
          %v642 = vld [vmem:[%s510 + $0x4] sm:$0xf]
          %v643 = vld [vmem:[%s510 + $0x8] sm:$0xf]
          %v644 = vld [vmem:[%s510 + $0xc] sm:$0xf]
          %v645 = vld [vmem:[%s510 + $0x10] sm:$0xf]
          %v646 = vld [vmem:[%s510 + $0x14] sm:$0xf]
          %v647 = vld [vmem:[%s510 + $0x18] sm:$0xf]
          %v648 = vld [vmem:[%s510 + $0x1c] sm:$0xf]
          %v649 = vld [vmem:[%s510 + $0x20] sm:$0xf]
          %v650 = vld [vmem:[%s510 + $0x24] sm:$0xf]
          %v651 = vld [vmem:[%s510 + $0x28] sm:$0xf]
          %v652 = vld [vmem:[%s510 + $0x2c] sm:$0xf]
          %v653 = vld [vmem:[%s510 + $0x30] sm:$0xf]
          %v654 = vld [vmem:[%s510 + $0x34] sm:$0xf]
          %v655 = vld [vmem:[%s510 + $0x38] sm:$0xf]
          %v656 = vld [vmem:[%s510 + $0x3c] sm:$0xf]
          %v657 = vld [vmem:[%s510 + $0x40] sm:$0xf]
          %v658 = vld [vmem:[%s510 + $0x44] sm:$0xf]
          %v659 = vld [vmem:[%s510 + $0x48] sm:$0xf]
          %v660 = vld [vmem:[%s510 + $0x4c] sm:$0xf]
          %v661 = vld [vmem:[%s510 + $0x50] sm:$0xf]
          %v662 = vld [vmem:[%s510 + $0x54] sm:$0xf]
          %v663 = vld [vmem:[%s510 + $0x58] sm:$0xf]
          %v664 = vld [vmem:[%s510 + $0x5c] sm:$0xf]
          %v665 = vld [vmem:[%s510 + $0x60] sm:$0xf]
          %v666 = vld [vmem:[%s510 + $0x64] sm:$0xf]
          %v667 = vld [vmem:[%s510 + $0x68] sm:$0xf]
          %v668 = vld [vmem:[%s510 + $0x6c] sm:$0xf]
          %v669 = vld [vmem:[%s510 + $0x70] sm:$0xf]
          %v670 = vld [vmem:[%s510 + $0x74] sm:$0xf]
          %v671 = vld [vmem:[%s510 + $0x78] sm:$0xf]
          %v672 = vld [vmem:[%s510 + $0x7c] sm:$0xf]
          %v705 = vunpack.c.l.b16 %v609
          %v706 = vunpack.c.h.b16 %v609
          %v707 = vunpack.c.l.b16 %v610
          %v708 = vunpack.c.h.b16 %v610
          %v709 = vunpack.c.l.b16 %v611
          %v710 = vunpack.c.h.b16 %v611
          %v711 = vunpack.c.l.b16 %v612
          %v712 = vunpack.c.h.b16 %v612
          %v713 = vunpack.c.l.b16 %v613
          %v714 = vunpack.c.h.b16 %v613
          %v715 = vunpack.c.l.b16 %v614
          %v716 = vunpack.c.h.b16 %v614
          %v717 = vunpack.c.l.b16 %v615
          %v718 = vunpack.c.h.b16 %v615
          %v719 = vunpack.c.l.b16 %v616
          %v720 = vunpack.c.h.b16 %v616
          %v721 = vunpack.c.l.b16 %v617
          %v722 = vunpack.c.h.b16 %v617
          %v723 = vunpack.c.l.b16 %v618
          %v724 = vunpack.c.h.b16 %v618
          %v725 = vunpack.c.l.b16 %v619
          %v726 = vunpack.c.h.b16 %v619
          %v727 = vunpack.c.l.b16 %v620
          %v728 = vunpack.c.h.b16 %v620
          %v729 = vunpack.c.l.b16 %v621
          %v730 = vunpack.c.h.b16 %v621
          %v731 = vunpack.c.l.b16 %v622
          %v732 = vunpack.c.h.b16 %v622
          %v733 = vunpack.c.l.b16 %v623
          %v734 = vunpack.c.h.b16 %v623
          %v735 = vunpack.c.l.b16 %v624
          %v736 = vunpack.c.h.b16 %v624
          %v737 = vunpack.c.l.b16 %v625
          %v738 = vunpack.c.h.b16 %v625
          %v739 = vunpack.c.l.b16 %v626
          %v740 = vunpack.c.h.b16 %v626
          %v741 = vunpack.c.l.b16 %v627
          %v742 = vunpack.c.h.b16 %v627
          %v743 = vunpack.c.l.b16 %v628
          %v744 = vunpack.c.h.b16 %v628
          %v745 = vunpack.c.l.b16 %v629
          %v746 = vunpack.c.h.b16 %v629
          %v747 = vunpack.c.l.b16 %v630
          %v748 = vunpack.c.h.b16 %v630
          %v749 = vunpack.c.l.b16 %v631
          %v750 = vunpack.c.h.b16 %v631
          %v751 = vunpack.c.l.b16 %v632
          %v752 = vunpack.c.h.b16 %v632
          %v753 = vunpack.c.l.b16 %v633
          %v754 = vunpack.c.h.b16 %v633
          %v755 = vunpack.c.l.b16 %v634
          %v756 = vunpack.c.h.b16 %v634
          %v757 = vunpack.c.l.b16 %v635
          %v758 = vunpack.c.h.b16 %v635
          %v759 = vunpack.c.l.b16 %v636
          %v760 = vunpack.c.h.b16 %v636
          %v761 = vunpack.c.l.b16 %v637
          %v762 = vunpack.c.h.b16 %v637
          %v763 = vunpack.c.l.b16 %v638
          %v764 = vunpack.c.h.b16 %v638
          %v765 = vunpack.c.l.b16 %v639
          %v766 = vunpack.c.h.b16 %v639
          %v767 = vunpack.c.l.b16 %v640
          %v768 = vunpack.c.h.b16 %v640
          %v769 = vpack.c.b16 %v707, %v705
          %v770 = vpack.c.b16 %v708, %v706
          %v771 = vpack.c.b16 %v711, %v709
          %v772 = vpack.c.b16 %v712, %v710
          %v773 = vpack.c.b16 %v715, %v713
          %v774 = vpack.c.b16 %v716, %v714
          %v775 = vpack.c.b16 %v719, %v717
          %v776 = vpack.c.b16 %v720, %v718
          %v777 = vpack.c.b16 %v723, %v721
          %v778 = vpack.c.b16 %v724, %v722
          %v779 = vpack.c.b16 %v727, %v725
          %v780 = vpack.c.b16 %v728, %v726
          %v781 = vpack.c.b16 %v731, %v729
          %v782 = vpack.c.b16 %v732, %v730
          %v783 = vpack.c.b16 %v735, %v733
          %v784 = vpack.c.b16 %v736, %v734
          %v785 = vpack.c.b16 %v739, %v737
          %v786 = vpack.c.b16 %v740, %v738
          %v787 = vpack.c.b16 %v743, %v741
          %v788 = vpack.c.b16 %v744, %v742
          %v789 = vpack.c.b16 %v747, %v745
          %v790 = vpack.c.b16 %v748, %v746
          %v791 = vpack.c.b16 %v751, %v749
          %v792 = vpack.c.b16 %v752, %v750
          %v793 = vpack.c.b16 %v755, %v753
          %v794 = vpack.c.b16 %v756, %v754
          %v795 = vpack.c.b16 %v759, %v757
          %v796 = vpack.c.b16 %v760, %v758
          %v797 = vpack.c.b16 %v763, %v761
          %v798 = vpack.c.b16 %v764, %v762
          %v799 = vpack.c.b16 %v767, %v765
          %v800 = vpack.c.b16 %v768, %v766
          %v865 = vunpack.c.l.b16 %v641
          %v866 = vunpack.c.l.b16 %v642
          %v867 = vunpack.c.l.b16 %v643
          %v868 = vunpack.c.l.b16 %v644
          %v869 = vunpack.c.l.b16 %v645
          %v870 = vunpack.c.l.b16 %v646
          %v871 = vunpack.c.l.b16 %v647
          %v872 = vunpack.c.l.b16 %v648
          %v873 = vunpack.c.l.b16 %v649
          %v874 = vunpack.c.l.b16 %v650
          %v875 = vunpack.c.l.b16 %v651
          %v876 = vunpack.c.l.b16 %v652
          %v877 = vunpack.c.l.b16 %v653
          %v878 = vunpack.c.l.b16 %v654
          %v879 = vunpack.c.l.b16 %v655
          %v880 = vunpack.c.l.b16 %v656
          %v881 = vunpack.c.l.b16 %v657
          %v882 = vunpack.c.l.b16 %v658
          %v883 = vunpack.c.l.b16 %v659
          %v884 = vunpack.c.l.b16 %v660
          %v885 = vunpack.c.l.b16 %v661
          %v886 = vunpack.c.l.b16 %v662
          %v887 = vunpack.c.l.b16 %v663
          %v888 = vunpack.c.l.b16 %v664
          %v889 = vunpack.c.l.b16 %v665
          %v890 = vunpack.c.l.b16 %v666
          %v891 = vunpack.c.l.b16 %v667
          %v892 = vunpack.c.l.b16 %v668
          %v893 = vunpack.c.l.b16 %v669
          %v894 = vunpack.c.l.b16 %v670
          %v895 = vunpack.c.l.b16 %v671
          %v896 = vunpack.c.l.b16 %v672
          %v897 = vpack.c.b16 %v866, %v865
          %v898 = vpack.c.b16 %v868, %v867
          %v899 = vpack.c.b16 %v870, %v869
          %v900 = vpack.c.b16 %v872, %v871
          %v901 = vpack.c.b16 %v874, %v873
          %v902 = vpack.c.b16 %v876, %v875
          %v903 = vpack.c.b16 %v878, %v877
          %v904 = vpack.c.b16 %v880, %v879
          %v905 = vpack.c.b16 %v882, %v881
          %v906 = vpack.c.b16 %v884, %v883
          %v907 = vpack.c.b16 %v886, %v885
          %v908 = vpack.c.b16 %v888, %v887
          %v909 = vpack.c.b16 %v890, %v889
          %v910 = vpack.c.b16 %v892, %v891
          %v911 = vpack.c.b16 %v894, %v893
          %v912 = vpack.c.b16 %v896, %v895
          %929 = vmatpush.bf16.msra.mxu0 %v904
          %930 = vmatpush.bf16.msra.mxu0 %v903
          %931 = vmatpush.bf16.msra.mxu0 %v902
          %932 = vmatpush.bf16.msra.mxu0 %v901
          %933 = vmatpush.bf16.msra.mxu0 %v900
          %934 = vmatpush.bf16.msra.mxu0 %v899
          %935 = vmatpush.bf16.msra.mxu0 %v898
          %936 = vmatpush.bf16.msra.mxu0 %v897
          %937 = vmatmul.bf16.gmra.mxu0 %v769
          %v938 = vpop.f32.mrf.mxu0
          %v939 = vadd.f32 0.0, %v938
          %v940 = vpop.f32.mrf.mxu0
          %v941 = vadd.f32 0.0, %v940
          %942 = vmatmul.bf16.gmra.mxu0 %v771
          %v943 = vpop.f32.mrf.mxu0
          %v944 = vadd.f32 0.0, %v943
          %v945 = vpop.f32.mrf.mxu0
          %v946 = vadd.f32 0.0, %v945
          %947 = vmatmul.bf16.gmra.mxu0 %v773
          %v948 = vpop.f32.mrf.mxu0
          %v949 = vadd.f32 0.0, %v948
          %v950 = vpop.f32.mrf.mxu0
          %v951 = vadd.f32 0.0, %v950
          %952 = vmatmul.bf16.gmra.mxu0 %v775
          %v953 = vpop.f32.mrf.mxu0
          %v954 = vadd.f32 0.0, %v953
          %v955 = vpop.f32.mrf.mxu0
          %v956 = vadd.f32 0.0, %v955
          %957 = vmatmul.bf16.gmra.mxu0 %v777
          %v958 = vpop.f32.mrf.mxu0
          %v959 = vadd.f32 0.0, %v958
          %v960 = vpop.f32.mrf.mxu0
          %v961 = vadd.f32 0.0, %v960
          %962 = vmatmul.bf16.gmra.mxu0 %v779
          %v963 = vpop.f32.mrf.mxu0
          %v964 = vadd.f32 0.0, %v963
          %v965 = vpop.f32.mrf.mxu0
          %v966 = vadd.f32 0.0, %v965
          %967 = vmatmul.bf16.gmra.mxu0 %v781
          %v968 = vpop.f32.mrf.mxu0
          %v969 = vadd.f32 0.0, %v968
          %v970 = vpop.f32.mrf.mxu0
          %v971 = vadd.f32 0.0, %v970
          %972 = vmatmul.bf16.gmra.mxu0 %v783
          %v973 = vpop.f32.mrf.mxu0
          %v974 = vadd.f32 0.0, %v973
          %v975 = vpop.f32.mrf.mxu0
          %v976 = vadd.f32 0.0, %v975
          %977 = vmatmul.bf16.gmra.mxu0 %v785
          %v978 = vpop.f32.mrf.mxu0
          %v979 = vadd.f32 0.0, %v978
          %v980 = vpop.f32.mrf.mxu0
          %v981 = vadd.f32 0.0, %v980
          %982 = vmatmul.bf16.gmra.mxu0 %v787
          %v983 = vpop.f32.mrf.mxu0
          %v984 = vadd.f32 0.0, %v983
          %v985 = vpop.f32.mrf.mxu0
          %v986 = vadd.f32 0.0, %v985
          %987 = vmatmul.bf16.gmra.mxu0 %v789
          %v988 = vpop.f32.mrf.mxu0
          %v989 = vadd.f32 0.0, %v988
          %v990 = vpop.f32.mrf.mxu0
          %v991 = vadd.f32 0.0, %v990
          %992 = vmatmul.bf16.gmra.mxu0 %v791
          %v993 = vpop.f32.mrf.mxu0
          %v994 = vadd.f32 0.0, %v993
          %v995 = vpop.f32.mrf.mxu0
          %v996 = vadd.f32 0.0, %v995
          %997 = vmatmul.bf16.gmra.mxu0 %v793
          %v998 = vpop.f32.mrf.mxu0
          %v999 = vadd.f32 0.0, %v998
          %v1000 = vpop.f32.mrf.mxu0
          %v1001 = vadd.f32 0.0, %v1000
          %1002 = vmatmul.bf16.gmra.mxu0 %v795
          %v1003 = vpop.f32.mrf.mxu0
          %v1004 = vadd.f32 0.0, %v1003
          %v1005 = vpop.f32.mrf.mxu0
          %v1006 = vadd.f32 0.0, %v1005
          %1007 = vmatmul.bf16.gmra.mxu0 %v797
          %v1008 = vpop.f32.mrf.mxu0
          %v1009 = vadd.f32 0.0, %v1008
          %v1010 = vpop.f32.mrf.mxu0
          %v1011 = vadd.f32 0.0, %v1010
          %1012 = vmatmul.bf16.gmra.mxu0 %v799
          %v1013 = vpop.f32.mrf.mxu0
          %v1014 = vadd.f32 0.0, %v1013
          %v1015 = vpop.f32.mrf.mxu0
          %v1016 = vadd.f32 0.0, %v1015
          %1017 = vdwg.mxu0
          %1018 = vmatpush.bf16.msra.mxu0 %v912
          %1019 = vmatpush.bf16.msra.mxu0 %v911
          %1020 = vmatpush.bf16.msra.mxu0 %v910
          %1021 = vmatpush.bf16.msra.mxu0 %v909
          %1022 = vmatpush.bf16.msra.mxu0 %v908
          %1023 = vmatpush.bf16.msra.mxu0 %v907
          %1024 = vmatpush.bf16.msra.mxu0 %v906
          %1025 = vmatpush.bf16.msra.mxu0 %v905
          %1026 = vmatmul.bf16.gmra.mxu0 %v770
          %v1027 = vpop.f32.mrf.mxu0
          %v1028 = vadd.f32 %v939, %v1027
          %v1029 = vpop.f32.mrf.mxu0
          %v1030 = vadd.f32 %v941, %v1029
          %1031 = vmatmul.bf16.gmra.mxu0 %v772
          %v1032 = vpop.f32.mrf.mxu0
          %v1033 = vadd.f32 %v944, %v1032
          %v1034 = vpop.f32.mrf.mxu0
          %v1035 = vadd.f32 %v946, %v1034
          %1036 = vmatmul.bf16.gmra.mxu0 %v774
          %v1037 = vpop.f32.mrf.mxu0
          %v1038 = vadd.f32 %v949, %v1037
          %v1039 = vpop.f32.mrf.mxu0
          %v1040 = vadd.f32 %v951, %v1039
          %1041 = vmatmul.bf16.gmra.mxu0 %v776
          %v1042 = vpop.f32.mrf.mxu0
          %v1043 = vadd.f32 %v954, %v1042
          %v1044 = vpop.f32.mrf.mxu0
          %v1045 = vadd.f32 %v956, %v1044
          %1046 = vmatmul.bf16.gmra.mxu0 %v778
          %v1047 = vpop.f32.mrf.mxu0
          %v1048 = vadd.f32 %v959, %v1047
          %v1049 = vpop.f32.mrf.mxu0
          %v1050 = vadd.f32 %v961, %v1049
          %1051 = vmatmul.bf16.gmra.mxu0 %v780
          %v1052 = vpop.f32.mrf.mxu0
          %v1053 = vadd.f32 %v964, %v1052
          %v1054 = vpop.f32.mrf.mxu0
          %v1055 = vadd.f32 %v966, %v1054
          %1056 = vmatmul.bf16.gmra.mxu0 %v782
          %v1057 = vpop.f32.mrf.mxu0
          %v1058 = vadd.f32 %v969, %v1057
          %v1059 = vpop.f32.mrf.mxu0
          %v1060 = vadd.f32 %v971, %v1059
          %1061 = vmatmul.bf16.gmra.mxu0 %v784
          %v1062 = vpop.f32.mrf.mxu0
          %v1063 = vadd.f32 %v974, %v1062
          %v1064 = vpop.f32.mrf.mxu0
          %v1065 = vadd.f32 %v976, %v1064
          %1066 = vmatmul.bf16.gmra.mxu0 %v786
          %v1067 = vpop.f32.mrf.mxu0
          %v1068 = vadd.f32 %v979, %v1067
          %v1069 = vpop.f32.mrf.mxu0
          %v1070 = vadd.f32 %v981, %v1069
          %1071 = vmatmul.bf16.gmra.mxu0 %v788
          %v1072 = vpop.f32.mrf.mxu0
          %v1073 = vadd.f32 %v984, %v1072
          %v1074 = vpop.f32.mrf.mxu0
          %v1075 = vadd.f32 %v986, %v1074
          %1076 = vmatmul.bf16.gmra.mxu0 %v790
          %v1077 = vpop.f32.mrf.mxu0
          %v1078 = vadd.f32 %v989, %v1077
          %v1079 = vpop.f32.mrf.mxu0
          %v1080 = vadd.f32 %v991, %v1079
          %1081 = vmatmul.bf16.gmra.mxu0 %v792
          %v1082 = vpop.f32.mrf.mxu0
          %v1083 = vadd.f32 %v994, %v1082
          %v1084 = vpop.f32.mrf.mxu0
          %v1085 = vadd.f32 %v996, %v1084
          %1086 = vmatmul.bf16.gmra.mxu0 %v794
          %v1087 = vpop.f32.mrf.mxu0
          %v1088 = vadd.f32 %v999, %v1087
          %v1089 = vpop.f32.mrf.mxu0
          %v1090 = vadd.f32 %v1001, %v1089
          %1091 = vmatmul.bf16.gmra.mxu0 %v796
          %v1092 = vpop.f32.mrf.mxu0
          %v1093 = vadd.f32 %v1004, %v1092
          %v1094 = vpop.f32.mrf.mxu0
          %v1095 = vadd.f32 %v1006, %v1094
          %1096 = vmatmul.bf16.gmra.mxu0 %v798
          %v1097 = vpop.f32.mrf.mxu0
          %v1098 = vadd.f32 %v1009, %v1097
          %v1099 = vpop.f32.mrf.mxu0
          %v1100 = vadd.f32 %v1011, %v1099
          %1101 = vmatmul.bf16.gmra.mxu0 %v800
          %v1102 = vpop.f32.mrf.mxu0
          %v1103 = vadd.f32 %v1014, %v1102
          %v1104 = vpop.f32.mrf.mxu0
          %v1105 = vadd.f32 %v1016, %v1104
          %1106 = vdwg.mxu0
          %v1107 = vadd.f32 %v577, %v1028
          %v1108 = vadd.f32 %v578, %v1030
          %v1109 = vadd.f32 %v579, %v1033
          %v1110 = vadd.f32 %v580, %v1035
          %v1111 = vadd.f32 %v581, %v1038
          %v1112 = vadd.f32 %v582, %v1040
          %v1113 = vadd.f32 %v583, %v1043
          %v1114 = vadd.f32 %v584, %v1045
          %v1115 = vadd.f32 %v585, %v1048
          %v1116 = vadd.f32 %v586, %v1050
          %v1117 = vadd.f32 %v587, %v1053
          %v1118 = vadd.f32 %v588, %v1055
          %v1119 = vadd.f32 %v589, %v1058
          %v1120 = vadd.f32 %v590, %v1060
          %v1121 = vadd.f32 %v591, %v1063
          %v1122 = vadd.f32 %v592, %v1065
          %v1123 = vadd.f32 %v593, %v1068
          %v1124 = vadd.f32 %v594, %v1070
          %v1125 = vadd.f32 %v595, %v1073
          %v1126 = vadd.f32 %v596, %v1075
          %v1127 = vadd.f32 %v597, %v1078
          %v1128 = vadd.f32 %v598, %v1080
          %v1129 = vadd.f32 %v599, %v1083
          %v1130 = vadd.f32 %v600, %v1085
          %v1131 = vadd.f32 %v601, %v1088
          %v1132 = vadd.f32 %v602, %v1090
          %v1133 = vadd.f32 %v603, %v1093
          %v1134 = vadd.f32 %v604, %v1095
          %v1135 = vadd.f32 %v605, %v1098
          %v1136 = vadd.f32 %v606, %v1100
          %v1137 = vadd.f32 %v607, %v1103
          %v1138 = vadd.f32 %v608, %v1105
          %1139 = vst [vmem:[#allocation2] sm:$0xff] %v1107
          %1140 = vst [vmem:[#allocation2 + $0x8] sm:$0xff] %v1108
          %1141 = vst [vmem:[#allocation2 + $0x10] sm:$0xff] %v1109
          %1142 = vst [vmem:[#allocation2 + $0x18] sm:$0xff] %v1110
          %1143 = vst [vmem:[#allocation2 + $0x20] sm:$0xff] %v1111
          %1144 = vst [vmem:[#allocation2 + $0x28] sm:$0xff] %v1112
          %1145 = vst [vmem:[#allocation2 + $0x30] sm:$0xff] %v1113
          %1146 = vst [vmem:[#allocation2 + $0x38] sm:$0xff] %v1114
          %1147 = vst [vmem:[#allocation2 + $0x40] sm:$0xff] %v1115
          %1148 = vst [vmem:[#allocation2 + $0x48] sm:$0xff] %v1116
          %1149 = vst [vmem:[#allocation2 + $0x50] sm:$0xff] %v1117
          %1150 = vst [vmem:[#allocation2 + $0x58] sm:$0xff] %v1118
          %1151 = vst [vmem:[#allocation2 + $0x60] sm:$0xff] %v1119
          %1152 = vst [vmem:[#allocation2 + $0x68] sm:$0xff] %v1120
          %1153 = vst [vmem:[#allocation2 + $0x70] sm:$0xff] %v1121
          %1154 = vst [vmem:[#allocation2 + $0x78] sm:$0xff] %v1122
          %1155 = vst [vmem:[#allocation2 + $0x80] sm:$0xff] %v1123
          %1156 = vst [vmem:[#allocation2 + $0x88] sm:$0xff] %v1124
          %1157 = vst [vmem:[#allocation2 + $0x90] sm:$0xff] %v1125
          %1158 = vst [vmem:[#allocation2 + $0x98] sm:$0xff] %v1126
          %1159 = vst [vmem:[#allocation2 + $0xa0] sm:$0xff] %v1127
          %1160 = vst [vmem:[#allocation2 + $0xa8] sm:$0xff] %v1128
          %1161 = vst [vmem:[#allocation2 + $0xb0] sm:$0xff] %v1129
          %1162 = vst [vmem:[#allocation2 + $0xb8] sm:$0xff] %v1130
          %1163 = vst [vmem:[#allocation2 + $0xc0] sm:$0xff] %v1131
          %1164 = vst [vmem:[#allocation2 + $0xc8] sm:$0xff] %v1132
          %1165 = vst [vmem:[#allocation2 + $0xd0] sm:$0xff] %v1133
          %1166 = vst [vmem:[#allocation2 + $0xd8] sm:$0xff] %v1134
          %1167 = vst [vmem:[#allocation2 + $0xe0] sm:$0xff] %v1135
          %1168 = vst [vmem:[#allocation2 + $0xe8] sm:$0xff] %v1136
          %1169 = vst [vmem:[#allocation2 + $0xf0] sm:$0xff] %v1137
          %1170 = vst [vmem:[#allocation2 + $0xf8] sm:$0xff] %v1138
        $region78: #{protein_module_forward.4} parent=65 // pred_fallthru
          _
        %p1171 = scmp.eq.s32.totalorder %s36, 2
        // Predicated region
        $region79: #{protein_module_forward.4} parent=65 // pred_check
          %p1172 = pneg %p1171
        $region80: #{protein_module_forward.4} parent=65 // pred_check_branch
          %1174 = sbr.rel (%p1172) target = $region82
        $region81: #{protein_module_forward.4} parent=65 // pred_region
          %v1175 = vld [vmem:[%s524] sm:$0xff]
          %v1176 = vld [vmem:[%s524 + $0x8] sm:$0xff]
          %v1177 = vld [vmem:[%s524 + $0x10] sm:$0xff]
          %v1178 = vld [vmem:[%s524 + $0x18] sm:$0xff]
          %v1179 = vld [vmem:[%s524 + $0x20] sm:$0xff]
          %v1180 = vld [vmem:[%s524 + $0x28] sm:$0xff]
          %v1181 = vld [vmem:[%s524 + $0x30] sm:$0xff]
          %v1182 = vld [vmem:[%s524 + $0x38] sm:$0xff]
          %v1183 = vld [vmem:[%s524 + $0x40] sm:$0xff]
          %v1184 = vld [vmem:[%s524 + $0x48] sm:$0xff]
          %v1185 = vld [vmem:[%s524 + $0x50] sm:$0xff]
          %v1186 = vld [vmem:[%s524 + $0x58] sm:$0xff]
          %v1187 = vld [vmem:[%s524 + $0x60] sm:$0xff]
          %v1188 = vld [vmem:[%s524 + $0x68] sm:$0xff]
          %v1189 = vld [vmem:[%s524 + $0x70] sm:$0xff]
          %v1190 = vld [vmem:[%s524 + $0x78] sm:$0xff]
          %v1191 = vld [vmem:[%s524 + $0x80] sm:$0xff]
          %v1192 = vld [vmem:[%s524 + $0x88] sm:$0xff]
          %v1193 = vld [vmem:[%s524 + $0x90] sm:$0xff]
          %v1194 = vld [vmem:[%s524 + $0x98] sm:$0xff]
          %v1195 = vld [vmem:[%s524 + $0xa0] sm:$0xff]
          %v1196 = vld [vmem:[%s524 + $0xa8] sm:$0xff]
          %v1197 = vld [vmem:[%s524 + $0xb0] sm:$0xff]
          %v1198 = vld [vmem:[%s524 + $0xb8] sm:$0xff]
          %v1199 = vld [vmem:[%s524 + $0xc0] sm:$0xff]
          %v1200 = vld [vmem:[%s524 + $0xc8] sm:$0xff]
          %v1201 = vld [vmem:[%s524 + $0xd0] sm:$0xff]
          %v1202 = vld [vmem:[%s524 + $0xd8] sm:$0xff]
          %v1203 = vld [vmem:[%s524 + $0xe0] sm:$0xff]
          %v1204 = vld [vmem:[%s524 + $0xe8] sm:$0xff]
          %v1205 = vld [vmem:[%s524 + $0xf0] sm:$0xff]
          %v1206 = vld [vmem:[%s524 + $0xf8] sm:$0xff]
          %v1207 = vld [vmem:[#allocation2] sm:$0xff]
          %v1208 = vld [vmem:[#allocation2 + $0x8] sm:$0xff]
          %v1209 = vld [vmem:[#allocation2 + $0x10] sm:$0xff]
          %v1210 = vld [vmem:[#allocation2 + $0x18] sm:$0xff]
          %v1211 = vld [vmem:[#allocation2 + $0x20] sm:$0xff]
          %v1212 = vld [vmem:[#allocation2 + $0x28] sm:$0xff]
          %v1213 = vld [vmem:[#allocation2 + $0x30] sm:$0xff]
          %v1214 = vld [vmem:[#allocation2 + $0x38] sm:$0xff]
          %v1215 = vld [vmem:[#allocation2 + $0x40] sm:$0xff]
          %v1216 = vld [vmem:[#allocation2 + $0x48] sm:$0xff]
          %v1217 = vld [vmem:[#allocation2 + $0x50] sm:$0xff]
          %v1218 = vld [vmem:[#allocation2 + $0x58] sm:$0xff]
          %v1219 = vld [vmem:[#allocation2 + $0x60] sm:$0xff]
          %v1220 = vld [vmem:[#allocation2 + $0x68] sm:$0xff]
          %v1221 = vld [vmem:[#allocation2 + $0x70] sm:$0xff]
          %v1222 = vld [vmem:[#allocation2 + $0x78] sm:$0xff]
          %v1223 = vld [vmem:[#allocation2 + $0x80] sm:$0xff]
          %v1224 = vld [vmem:[#allocation2 + $0x88] sm:$0xff]
          %v1225 = vld [vmem:[#allocation2 + $0x90] sm:$0xff]
          %v1226 = vld [vmem:[#allocation2 + $0x98] sm:$0xff]
          %v1227 = vld [vmem:[#allocation2 + $0xa0] sm:$0xff]
          %v1228 = vld [vmem:[#allocation2 + $0xa8] sm:$0xff]
          %v1229 = vld [vmem:[#allocation2 + $0xb0] sm:$0xff]
          %v1230 = vld [vmem:[#allocation2 + $0xb8] sm:$0xff]
          %v1231 = vld [vmem:[#allocation2 + $0xc0] sm:$0xff]
          %v1232 = vld [vmem:[#allocation2 + $0xc8] sm:$0xff]
          %v1233 = vld [vmem:[#allocation2 + $0xd0] sm:$0xff]
          %v1234 = vld [vmem:[#allocation2 + $0xd8] sm:$0xff]
          %v1235 = vld [vmem:[#allocation2 + $0xe0] sm:$0xff]
          %v1236 = vld [vmem:[#allocation2 + $0xe8] sm:$0xff]
          %v1237 = vld [vmem:[#allocation2 + $0xf0] sm:$0xff]
          %v1238 = vld [vmem:[#allocation2 + $0xf8] sm:$0xff]
          %1240 = vset.pattern.permute.xlu0 0
          %1241 = vperm.xlu0 %1240, %v1175
          %v1242 = vpop.permute.xlu0 %1241
          %1245 = vset.pattern.permute.xlu0 0
          %1246 = vperm.xlu0 %1245, %v1176
          %v1247 = vpop.permute.xlu0 %1246
          %1250 = vset.pattern.permute.xlu0 0
          %1251 = vperm.xlu0 %1250, %v1177
          %v1252 = vpop.permute.xlu0 %1251
          %1255 = vset.pattern.permute.xlu0 0
          %1256 = vperm.xlu0 %1255, %v1178
          %v1257 = vpop.permute.xlu0 %1256
          %1260 = vset.pattern.permute.xlu0 0
          %1261 = vperm.xlu0 %1260, %v1179
          %v1262 = vpop.permute.xlu0 %1261
          %1265 = vset.pattern.permute.xlu0 0
          %1266 = vperm.xlu0 %1265, %v1180
          %v1267 = vpop.permute.xlu0 %1266
          %1270 = vset.pattern.permute.xlu0 0
          %1271 = vperm.xlu0 %1270, %v1181
          %v1272 = vpop.permute.xlu0 %1271
          %1275 = vset.pattern.permute.xlu0 0
          %1276 = vperm.xlu0 %1275, %v1182
          %v1277 = vpop.permute.xlu0 %1276
          %1280 = vset.pattern.permute.xlu0 0
          %1281 = vperm.xlu0 %1280, %v1183
          %v1282 = vpop.permute.xlu0 %1281
          %1285 = vset.pattern.permute.xlu0 0
          %1286 = vperm.xlu0 %1285, %v1184
          %v1287 = vpop.permute.xlu0 %1286
          %1290 = vset.pattern.permute.xlu0 0
          %1291 = vperm.xlu0 %1290, %v1185
          %v1292 = vpop.permute.xlu0 %1291
          %1295 = vset.pattern.permute.xlu0 0
          %1296 = vperm.xlu0 %1295, %v1186
          %v1297 = vpop.permute.xlu0 %1296
          %1300 = vset.pattern.permute.xlu0 0
          %1301 = vperm.xlu0 %1300, %v1187
          %v1302 = vpop.permute.xlu0 %1301
          %1305 = vset.pattern.permute.xlu0 0
          %1306 = vperm.xlu0 %1305, %v1188
          %v1307 = vpop.permute.xlu0 %1306
          %1310 = vset.pattern.permute.xlu0 0
          %1311 = vperm.xlu0 %1310, %v1189
          %v1312 = vpop.permute.xlu0 %1311
          %1315 = vset.pattern.permute.xlu0 0
          %1316 = vperm.xlu0 %1315, %v1190
          %v1317 = vpop.permute.xlu0 %1316
          %1320 = vset.pattern.permute.xlu0 0
          %1321 = vperm.xlu0 %1320, %v1191
          %v1322 = vpop.permute.xlu0 %1321
          %1325 = vset.pattern.permute.xlu0 0
          %1326 = vperm.xlu0 %1325, %v1192
          %v1327 = vpop.permute.xlu0 %1326
          %1330 = vset.pattern.permute.xlu0 0
          %1331 = vperm.xlu0 %1330, %v1193
          %v1332 = vpop.permute.xlu0 %1331
          %1335 = vset.pattern.permute.xlu0 0
          %1336 = vperm.xlu0 %1335, %v1194
          %v1337 = vpop.permute.xlu0 %1336
          %1340 = vset.pattern.permute.xlu0 0
          %1341 = vperm.xlu0 %1340, %v1195
          %v1342 = vpop.permute.xlu0 %1341
          %1345 = vset.pattern.permute.xlu0 0
          %1346 = vperm.xlu0 %1345, %v1196
          %v1347 = vpop.permute.xlu0 %1346
          %1350 = vset.pattern.permute.xlu0 0
          %1351 = vperm.xlu0 %1350, %v1197
          %v1352 = vpop.permute.xlu0 %1351
          %1355 = vset.pattern.permute.xlu0 0
          %1356 = vperm.xlu0 %1355, %v1198
          %v1357 = vpop.permute.xlu0 %1356
          %1360 = vset.pattern.permute.xlu0 0
          %1361 = vperm.xlu0 %1360, %v1199
          %v1362 = vpop.permute.xlu0 %1361
          %1365 = vset.pattern.permute.xlu0 0
          %1366 = vperm.xlu0 %1365, %v1200
          %v1367 = vpop.permute.xlu0 %1366
          %1370 = vset.pattern.permute.xlu0 0
          %1371 = vperm.xlu0 %1370, %v1201
          %v1372 = vpop.permute.xlu0 %1371
          %1375 = vset.pattern.permute.xlu0 0
          %1376 = vperm.xlu0 %1375, %v1202
          %v1377 = vpop.permute.xlu0 %1376
          %1380 = vset.pattern.permute.xlu0 0
          %1381 = vperm.xlu0 %1380, %v1203
          %v1382 = vpop.permute.xlu0 %1381
          %1385 = vset.pattern.permute.xlu0 0
          %1386 = vperm.xlu0 %1385, %v1204
          %v1387 = vpop.permute.xlu0 %1386
          %1390 = vset.pattern.permute.xlu0 0
          %1391 = vperm.xlu0 %1390, %v1205
          %v1392 = vpop.permute.xlu0 %1391
          %1395 = vset.pattern.permute.xlu0 0
          %1396 = vperm.xlu0 %1395, %v1206
          %v1397 = vpop.permute.xlu0 %1396
          %v1399 = vmul.f32 %v1242, %v1207
          %v1400 = vmul.f32 %v1247, %v1208
          %v1401 = vmul.f32 %v1252, %v1209
          %v1402 = vmul.f32 %v1257, %v1210
          %v1403 = vmul.f32 %v1262, %v1211
          %v1404 = vmul.f32 %v1267, %v1212
          %v1405 = vmul.f32 %v1272, %v1213
          %v1406 = vmul.f32 %v1277, %v1214
          %v1407 = vmul.f32 %v1282, %v1215
          %v1408 = vmul.f32 %v1287, %v1216
          %v1409 = vmul.f32 %v1292, %v1217
          %v1410 = vmul.f32 %v1297, %v1218
          %v1411 = vmul.f32 %v1302, %v1219
          %v1412 = vmul.f32 %v1307, %v1220
          %v1413 = vmul.f32 %v1312, %v1221
          %v1414 = vmul.f32 %v1317, %v1222
          %v1415 = vmul.f32 %v1322, %v1223
          %v1416 = vmul.f32 %v1327, %v1224
          %v1417 = vmul.f32 %v1332, %v1225
          %v1418 = vmul.f32 %v1337, %v1226
          %v1419 = vmul.f32 %v1342, %v1227
          %v1420 = vmul.f32 %v1347, %v1228
          %v1421 = vmul.f32 %v1352, %v1229
          %v1422 = vmul.f32 %v1357, %v1230
          %v1423 = vmul.f32 %v1362, %v1231
          %v1424 = vmul.f32 %v1367, %v1232
          %v1425 = vmul.f32 %v1372, %v1233
          %v1426 = vmul.f32 %v1377, %v1234
          %v1427 = vmul.f32 %v1382, %v1235
          %v1428 = vmul.f32 %v1387, %v1236
          %v1429 = vmul.f32 %v1392, %v1237
          %v1430 = vmul.f32 %v1397, %v1238
          %1431 = vst [vmem:[%s530] sm:$0xff] %v1399
          %1432 = vst [vmem:[%s530 + $0x8] sm:$0xff] %v1400
          %1433 = vst [vmem:[%s530 + $0x10] sm:$0xff] %v1401
          %1434 = vst [vmem:[%s530 + $0x18] sm:$0xff] %v1402
          %1435 = vst [vmem:[%s530 + $0x20] sm:$0xff] %v1403
          %1436 = vst [vmem:[%s530 + $0x28] sm:$0xff] %v1404
          %1437 = vst [vmem:[%s530 + $0x30] sm:$0xff] %v1405
          %1438 = vst [vmem:[%s530 + $0x38] sm:$0xff] %v1406
          %1439 = vst [vmem:[%s530 + $0x40] sm:$0xff] %v1407
          %1440 = vst [vmem:[%s530 + $0x48] sm:$0xff] %v1408
          %1441 = vst [vmem:[%s530 + $0x50] sm:$0xff] %v1409
          %1442 = vst [vmem:[%s530 + $0x58] sm:$0xff] %v1410
          %1443 = vst [vmem:[%s530 + $0x60] sm:$0xff] %v1411
          %1444 = vst [vmem:[%s530 + $0x68] sm:$0xff] %v1412
          %1445 = vst [vmem:[%s530 + $0x70] sm:$0xff] %v1413
          %1446 = vst [vmem:[%s530 + $0x78] sm:$0xff] %v1414
          %1447 = vst [vmem:[%s530 + $0x80] sm:$0xff] %v1415
          %1448 = vst [vmem:[%s530 + $0x88] sm:$0xff] %v1416
          %1449 = vst [vmem:[%s530 + $0x90] sm:$0xff] %v1417
          %1450 = vst [vmem:[%s530 + $0x98] sm:$0xff] %v1418
          %1451 = vst [vmem:[%s530 + $0xa0] sm:$0xff] %v1419
          %1452 = vst [vmem:[%s530 + $0xa8] sm:$0xff] %v1420
          %1453 = vst [vmem:[%s530 + $0xb0] sm:$0xff] %v1421
          %1454 = vst [vmem:[%s530 + $0xb8] sm:$0xff] %v1422
          %1455 = vst [vmem:[%s530 + $0xc0] sm:$0xff] %v1423
          %1456 = vst [vmem:[%s530 + $0xc8] sm:$0xff] %v1424
          %1457 = vst [vmem:[%s530 + $0xd0] sm:$0xff] %v1425
          %1458 = vst [vmem:[%s530 + $0xd8] sm:$0xff] %v1426
          %1459 = vst [vmem:[%s530 + $0xe0] sm:$0xff] %v1427
          %1460 = vst [vmem:[%s530 + $0xe8] sm:$0xff] %v1428
          %1461 = vst [vmem:[%s530 + $0xf0] sm:$0xff] %v1429
          %1462 = vst [vmem:[%s530 + $0xf8] sm:$0xff] %v1430
          %v1463 = vadd.f32 %v1399, %v1400
          %v1464 = vadd.f32 %v1463, %v1401
          %v1465 = vadd.f32 %v1464, %v1402
          %v1466 = vadd.f32 %v1465, %v1403
          %v1467 = vadd.f32 %v1466, %v1404
          %v1468 = vadd.f32 %v1467, %v1405
          %v1469 = vadd.f32 %v1468, %v1406
          %v1470 = vadd.f32 %v1469, %v1407
          %v1471 = vadd.f32 %v1470, %v1408
          %v1472 = vadd.f32 %v1471, %v1409
          %v1473 = vadd.f32 %v1472, %v1410
          %v1474 = vadd.f32 %v1473, %v1411
          %v1475 = vadd.f32 %v1474, %v1412
          %v1476 = vadd.f32 %v1475, %v1413
          %v1477 = vadd.f32 %v1476, %v1414
          %v1478 = vadd.f32 %v1477, %v1415
          %v1479 = vadd.f32 %v1478, %v1416
          %v1480 = vadd.f32 %v1479, %v1417
          %v1481 = vadd.f32 %v1480, %v1418
          %v1482 = vadd.f32 %v1481, %v1419
          %v1483 = vadd.f32 %v1482, %v1420
          %v1484 = vadd.f32 %v1483, %v1421
          %v1485 = vadd.f32 %v1484, %v1422
          %v1486 = vadd.f32 %v1485, %v1423
          %v1487 = vadd.f32 %v1486, %v1424
          %v1488 = vadd.f32 %v1487, %v1425
          %v1489 = vadd.f32 %v1488, %v1426
          %v1490 = vadd.f32 %v1489, %v1427
          %v1491 = vadd.f32 %v1490, %v1428
          %v1492 = vadd.f32 %v1491, %v1429
          %v1493 = vadd.f32 %v1492, %v1430
          %v1494 = vrot.slane %v1493, 4
          %v1495 = vadd.f32 %v1493, %v1494
          %v1496 = vrot.slane %v1495, 2
          %v1497 = vadd.f32 %v1495, %v1496
          %v1498 = vrot.slane %v1497, 1
          %v1499 = vadd.f32 %v1497, %v1498
          %v1500 = vmul.f32 %v1399, %v1399
          %v1501 = vmul.f32 %v1400, %v1400
          %v1502 = vmul.f32 %v1401, %v1401
          %v1503 = vmul.f32 %v1402, %v1402
          %v1504 = vmul.f32 %v1403, %v1403
          %v1505 = vmul.f32 %v1404, %v1404
          %v1506 = vmul.f32 %v1405, %v1405
          %v1507 = vmul.f32 %v1406, %v1406
          %v1508 = vmul.f32 %v1407, %v1407
          %v1509 = vmul.f32 %v1408, %v1408
          %v1510 = vmul.f32 %v1409, %v1409
          %v1511 = vmul.f32 %v1410, %v1410
          %v1512 = vmul.f32 %v1411, %v1411
          %v1513 = vmul.f32 %v1412, %v1412
          %v1514 = vmul.f32 %v1413, %v1413
          %v1515 = vmul.f32 %v1414, %v1414
          %v1516 = vmul.f32 %v1415, %v1415
          %v1517 = vmul.f32 %v1416, %v1416
          %v1518 = vmul.f32 %v1417, %v1417
          %v1519 = vmul.f32 %v1418, %v1418
          %v1520 = vmul.f32 %v1419, %v1419
          %v1521 = vmul.f32 %v1420, %v1420
          %v1522 = vmul.f32 %v1421, %v1421
          %v1523 = vmul.f32 %v1422, %v1422
          %v1524 = vmul.f32 %v1423, %v1423
          %v1525 = vmul.f32 %v1424, %v1424
          %v1526 = vmul.f32 %v1425, %v1425
          %v1527 = vmul.f32 %v1426, %v1426
          %v1528 = vmul.f32 %v1427, %v1427
          %v1529 = vmul.f32 %v1428, %v1428
          %v1530 = vmul.f32 %v1429, %v1429
          %v1531 = vmul.f32 %v1430, %v1430
          %v1532 = vadd.f32 %v1500, %v1501
          %v1533 = vadd.f32 %v1532, %v1502
          %v1534 = vadd.f32 %v1533, %v1503
          %v1535 = vadd.f32 %v1534, %v1504
          %v1536 = vadd.f32 %v1535, %v1505
          %v1537 = vadd.f32 %v1536, %v1506
          %v1538 = vadd.f32 %v1537, %v1507
          %v1539 = vadd.f32 %v1538, %v1508
          %v1540 = vadd.f32 %v1539, %v1509
          %v1541 = vadd.f32 %v1540, %v1510
          %v1542 = vadd.f32 %v1541, %v1511
          %v1543 = vadd.f32 %v1542, %v1512
          %v1544 = vadd.f32 %v1543, %v1513
          %v1545 = vadd.f32 %v1544, %v1514
          %v1546 = vadd.f32 %v1545, %v1515
          %v1547 = vadd.f32 %v1546, %v1516
          %v1548 = vadd.f32 %v1547, %v1517
          %v1549 = vadd.f32 %v1548, %v1518
          %v1550 = vadd.f32 %v1549, %v1519
          %v1551 = vadd.f32 %v1550, %v1520
          %v1552 = vadd.f32 %v1551, %v1521
          %v1553 = vadd.f32 %v1552, %v1522
          %v1554 = vadd.f32 %v1553, %v1523
          %v1555 = vadd.f32 %v1554, %v1524
          %v1556 = vadd.f32 %v1555, %v1525
          %v1557 = vadd.f32 %v1556, %v1526
          %v1558 = vadd.f32 %v1557, %v1527
          %v1559 = vadd.f32 %v1558, %v1528
          %v1560 = vadd.f32 %v1559, %v1529
          %v1561 = vadd.f32 %v1560, %v1530
          %v1562 = vadd.f32 %v1561, %v1531
          %v1563 = vrot.slane %v1562, 4
          %v1564 = vadd.f32 %v1562, %v1563
          %v1565 = vrot.slane %v1564, 2
          %v1566 = vadd.f32 %v1564, %v1565
          %v1567 = vrot.slane %v1566, 1
          %v1568 = vadd.f32 %v1566, %v1567
          %vm1569 = vcmask 1040384
          %v1570 = vsel %vm1569, %v1499, %v1568
          %1571 = vst [vmem:[%s535] sm:$0x3] %v1570
        $region82: #{protein_module_forward.4} parent=65 // pred_fallthru
          _
        %s1572 = smul.u32 32, %s35
        %p1573 = scmp.lt.s32.totalorder %s1572, 95
        %s1574 = scalar_select %p1573, %s1572, 95
        %s1575 = smul.addr %s1574, 8
        %s1576 = scalar_lea.vmem %s5, %s1575
        %p1577 = scmp.lt.s32.totalorder %s35, 2
        %s1578 = scalar_select %p1577, %s35, 2
        %s1579 = smul.addr %s1578, 2
        %s1580 = scalar_lea.vmem %s6, %s1579
        // Predicated region
        $region83: #{protein_module_forward.4} parent=65 // pred_check
          %p1581 = pneg %p173
        $region84: #{protein_module_forward.4} parent=65 // pred_check_branch
          %1583 = sbr.rel (%p1581) target = $region86
        $region85: #{protein_module_forward.4} parent=65 // pred_region
          %s1584 = smul.u32 32, %s35
        $region86: #{protein_module_forward.4} parent=65 // pred_fallthru
          _
        // Predicated region
        $region87: #{protein_module_forward.4} parent=65 // pred_check
          %p1585 = pneg %p199
        $region88: #{protein_module_forward.4} parent=65 // pred_check_branch
          %1587 = sbr.rel (%p1585) target = $region90
        $region89: #{protein_module_forward.4} parent=65 // pred_region
          _
        $region90: #{protein_module_forward.4} parent=65 // pred_fallthru
          _
      $region66: #{protein_module_forward.4} parent=5 // pred_fallthru
        _
      %p1588 = scmp.le.s32.totalorder 2, %s26
      // Predicated region
      $region91: #{protein_module_forward.4} parent=5 // pred_check
        %p1589 = pneg %p1588
      $region92: #{protein_module_forward.4} parent=5 // pred_check_branch
        %1591 = sbr.rel (%p1589) target = $region94
      $region93: #{protein_module_forward.4} parent=5 // pred_region
        %s1592 = ssub.s32 %s26, 2
        // Predicated region
        $region95: #{protein_module_forward.4} parent=93 // pred_check
          %p1593 = pneg %p179
        $region96: #{protein_module_forward.4} parent=93 // pred_check_branch
          %1595 = sbr.rel (%p1593) target = $region98
        $region97: #{protein_module_forward.4} parent=93 // pred_region
          %s1596 = smul.u32 32, %s37
          %p1597 = scmp.lt.s32.totalorder %s1596, 95
          %s1598 = scalar_select %p1597, %s1596, 95
          %s1599 = smul.addr %s1598, 8
          %s1600 = scalar_lea.vmem %s5, %s1599
        $region98: #{protein_module_forward.4} parent=93 // pred_fallthru
          _
        // Predicated region
        $region99: #{protein_module_forward.4} parent=93 // pred_check
          %p1601 = pneg %p205
        $region100: #{protein_module_forward.4} parent=93 // pred_check_branch
          %1603 = sbr.rel (%p1601) target = $region102
        $region101: #{protein_module_forward.4} parent=93 // pred_region
          %p1604 = scmp.lt.s32.totalorder %s37, 2
          %s1605 = scalar_select %p1604, %s37, 2
          %s1606 = smul.addr %s1605, 2
          %s1607 = scalar_lea.vmem %s6, %s1606
        $region102: #{protein_module_forward.4} parent=93 // pred_fallthru
          _
      $region94: #{protein_module_forward.4} parent=5 // pred_fallthru
        _
    $region6: #{protein_module_forward.4} parent=1 // loop_footer
      %s30 = sadd.s32 1, %s26
    $region7: #{protein_module_forward.4} parent=1 // loop_footer_branch
      %25 = sbr.rel target = $region3
    $region8: #{protein_module_forward.4} parent=1 // loop_exit
      _

</llo_original>
